<compile_context>
chip_gen: v6e
topology: v6e:2x2x1
jax: 0.10.0
libtpu: 0.0.40
codegen_flags: <defaults>
</compile_context>

<pallas_src>
import jax
import jax.numpy as jnp
from jax.experimental import pallas as pl
from jax.experimental.pallas import tpu as pltpu


def residual_layer_kernel(x_ref, w1_ref, b1_ref, w2_ref, b2_ref,
                          gamma_ref, beta_ref, o_ref):
    # lin1 + relu (dropout with p=0.0 is identity). bf16 MXU operands, f32 accumulate.
    h = jnp.dot(x_ref[...], w1_ref[...],
                preferred_element_type=jnp.float32) + b1_ref[...]
    h = jnp.maximum(h, 0.0)

    # lin2 + relu + residual
    y = jnp.dot(h.astype(jnp.bfloat16), w2_ref[...],
                preferred_element_type=jnp.float32) + b2_ref[...]
    y = jnp.maximum(y, 0.0) + h

    # LayerNorm over last dim (biased variance, eps = 1e-5, affine) — all f32.
    mean = jnp.mean(y, axis=-1, keepdims=True)
    centered = y - mean
    var = jnp.mean(centered * centered, axis=-1, keepdims=True)
    inv_std = jax.lax.rsqrt(var + 1e-5)
    out = (centered * inv_std) * gamma_ref[...] + beta_ref[...]
    o_ref[...] = out.astype(o_ref.dtype)   # bf16 writeback (halves output bytes)


def _batch_dim_semantics():
    """CORE_PARALLEL on v7x (2 TensorCores/chip); plain "parallel" elsewhere."""
    try:
        kind = jax.devices()[0].device_kind.lower()
        if "v7" in kind or "tpu7" in kind:
            return (pltpu.CORE_PARALLEL,)
    except Exception:
        pass
    return ("parallel",)


def residual_layer(x, w1, b1, w2, b2, gamma, beta, *,
                   tile_b=512, out_dtype=jnp.bfloat16):
    """x: (B, D_in) bf16; w1: (D_in, D_out) bf16; w2: (D_out, D_out) bf16;
    b1/b2/gamma/beta: (1, D_out) f32. Returns (B, D_out) out_dtype."""
    B, D_in = x.shape
    D_out = w1.shape[1]

    nbytes = lambda a: a.size * a.dtype.itemsize
    resident_bytes = sum(nbytes(a) for a in (w1, w2, b1, b2, gamma, beta))

    # Batch tile: multiple of 8 sublanes, no bigger than the (rounded-up) batch.
    tile_b = max(8, min(int(tile_b), ((B + 7) // 8) * 8))

    # Double-buffered streaming bytes (x tile in + out tile back) for a tile size.
    out_itemsize = jnp.dtype(out_dtype).itemsize
    def stream_bytes(tb):
        return 2 * tb * (D_in * x.dtype.itemsize + D_out * out_itemsize)

    # Keep resident params + streaming buffers inside a conservative 48 MiB budget
    # (fits v7x's 64 MiB physical VMEM with headroom, trivially fine on v5e/v6e's
    # 128 MiB). Shrink tile_b rather than silently over-requesting when D is large.
    VMEM_BUDGET = 48 << 20
    while tile_b > 8 and resident_bytes + stream_bytes(tile_b) > VMEM_BUDGET:
        tile_b = max(8, ((tile_b // 2) + 7) // 8 * 8)

    # Ragged tail: no jnp.pad — Pallas masks the final partial block.
    n_tiles = pl.cdiv(B, tile_b)

    vmem_limit = int(min(max(resident_bytes + stream_bytes(tile_b) + (8 << 20),
                             32 << 20), 64 << 20))

    # Resident operands: same block index every grid step -> fetched once.
    resident = lambda shape: pl.BlockSpec(shape, lambda i: (0, 0))

    return pl.pallas_call(
        residual_layer_kernel,
        out_shape=jax.ShapeDtypeStruct((B, D_out), out_dtype),
        grid=(n_tiles,),
        in_specs=[
            pl.BlockSpec((tile_b, D_in), lambda i: (i, 0)),   # x  (bf16, streamed)
            resident((D_in, D_out)),                          # w1 (bf16, resident)
            resident((1, D_out)),                             # b1
            resident((D_out, D_out)),                         # w2 (bf16, resident)
            resident((1, D_out)),                             # b2
            resident((1, D_out)),                             # gamma
            resident((1, D_out)),                             # beta
        ],
        out_specs=pl.BlockSpec((tile_b, D_out), lambda i: (i, 0)),
        compiler_params=pltpu.CompilerParams(
            dimension_semantics=_batch_dim_semantics(),
            vmem_limit_bytes=vmem_limit),
    )(x, w1, b1, w2, b2, gamma, beta)


def reference_bf16(x_bf16, w1_bf16, b1, w2_bf16, b2, gamma, beta):
    """Mirrors the kernel numerics (bf16 matmul operands, f32 accumulate/LN)."""
    h = jnp.maximum(
        jnp.dot(x_bf16, w1_bf16, preferred_element_type=jnp.float32) + b1, 0.0)
    y = jnp.maximum(
        jnp.dot(h.astype(jnp.bfloat16), w2_bf16,
                preferred_element_type=jnp.float32) + b2, 0.0) + h
    mean = jnp.mean(y, axis=-1, keepdims=True)
    var = jnp.mean((y - mean) ** 2, axis=-1, keepdims=True)
    return (y - mean) * jax.lax.rsqrt(var + 1e-5) * gamma + beta


def reference_f32(x, w1, b1, w2, b2, gamma, beta):
    """Pure f32 reference matching the PyTorch module semantics."""
    h = jnp.maximum(x @ w1 + b1, 0.0)
    y = jnp.maximum(h @ w2 + b2, 0.0) + h
    mean = jnp.mean(y, axis=-1, keepdims=True)
    var = jnp.mean((y - mean) ** 2, axis=-1, keepdims=True)
    return (y - mean) * jax.lax.rsqrt(var + 1e-5) * gamma + beta


if __name__ == "__main__":
    # Lane-dense feature dim (multiple of 128). B is deliberately NOT a multiple
    # of the batch tile so the no-pad masked-final-block path is exercised.
    B, D_IN, D_OUT = 1000, 128, 128
    TILE_B = 256

    key = jax.random.PRNGKey(0)
    kx, kw1, kb1, kw2, kb2 = jax.random.split(key, 5)

    # Deterministic param init mimicking nn.Linear's U(-1/sqrt(fan_in), 1/sqrt(fan_in)).
    bound1 = 1.0 / (D_IN ** 0.5)
    w1_f32 = jax.random.uniform(kw1, (D_IN, D_OUT), jnp.float32, -bound1, bound1)
    b1 = jax.random.uniform(kb1, (1, D_OUT), jnp.float32, -bound1, bound1)
    bound2 = 1.0 / (D_OUT ** 0.5)
    w2_f32 = jax.random.uniform(kw2, (D_OUT, D_OUT), jnp.float32, -bound2, bound2)
    b2 = jax.random.uniform(kb2, (1, D_OUT), jnp.float32, -bound2, bound2)

    # nn.LayerNorm default init: gamma = 1, beta = 0.
    gamma = jnp.ones((1, D_OUT), jnp.float32)
    beta = jnp.zeros((1, D_OUT), jnp.float32)

    # Producer emits bf16 activations and bf16 weights (halves HBM traffic + VMEM).
    x_f32 = jax.random.normal(kx, (B, D_IN), dtype=jnp.float32)
    x = x_f32.astype(jnp.bfloat16)
    w1 = w1_f32.astype(jnp.bfloat16)
    w2 = w2_f32.astype(jnp.bfloat16)

    out = residual_layer(x, w1, b1, w2, b2, gamma, beta, tile_b=TILE_B)
    out = jax.block_until_ready(out)
    assert out.shape == (B, D_OUT)
    assert out.dtype == jnp.bfloat16
    out_f32 = out.astype(jnp.float32)

    # Tight-ish check against a reference with identical bf16-matmul numerics
    # (difference = final bf16 output rounding only).
    ref_bf = reference_bf16(x, w1, b1, w2, b2, gamma, beta)
    assert jnp.allclose(out_f32, ref_bf, atol=5e-2, rtol=5e-2)

    # Loose check against the pure-f32 module semantics (bf16 rounding of
    # activations/weights/output).
    ref_f32 = reference_f32(x.astype(jnp.float32), w1_f32, b1, w2_f32, b2, gamma, beta)
    assert jnp.allclose(out_f32, ref_f32, atol=1e-1, rtol=1e-1)

    print("KERNEL_OK")
</pallas_src>

<mosaic_0001>
module attributes {stable_mosaic.version = 11 : i64} {
  func.func @residual_layer_kernel(%arg0: i32, %arg1: memref<256x128xbf16, #tpu.memory_space<vmem>>, %arg2: memref<128x128xbf16, #tpu.memory_space<vmem>>, %arg3: memref<1x128xf32, #tpu.memory_space<vmem>>, %arg4: memref<128x128xbf16, #tpu.memory_space<vmem>>, %arg5: memref<1x128xf32, #tpu.memory_space<vmem>>, %arg6: memref<1x128xf32, #tpu.memory_space<vmem>>, %arg7: memref<1x128xf32, #tpu.memory_space<vmem>>, %arg8: memref<256x128xbf16, #tpu.memory_space<vmem>>) attributes {dimension_semantics = [#tpu.dimension_semantics<parallel>], iteration_bounds = array<i64: 4>, scalar_prefetch = 0 : i64, scratch_operands = 0 : i64, tpu.core_type = #tpu.core_type<tc>, window_params = [{transform_indices = @transform_0, window_bounds = array<i64: 256, 128>}, {pipeline_mode = #tpu.pipeline_mode<synchronous>, transform_indices = @transform_1, window_bounds = array<i64: 128, 128>}, {pipeline_mode = #tpu.pipeline_mode<synchronous>, transform_indices = @transform_2, window_bounds = array<i64: 1, 128>}, {pipeline_mode = #tpu.pipeline_mode<synchronous>, transform_indices = @transform_3, window_bounds = array<i64: 128, 128>}, {pipeline_mode = #tpu.pipeline_mode<synchronous>, transform_indices = @transform_4, window_bounds = array<i64: 1, 128>}, {pipeline_mode = #tpu.pipeline_mode<synchronous>, transform_indices = @transform_5, window_bounds = array<i64: 1, 128>}, {pipeline_mode = #tpu.pipeline_mode<synchronous>, transform_indices = @transform_6, window_bounds = array<i64: 1, 128>}, {transform_indices = @transform_7, window_bounds = array<i64: 256, 128>}]} {
    %c0 = arith.constant 0 : index
    %c0_0 = arith.constant 0 : index
    %0 = vector.load %arg1[%c0, %c0_0] : memref<256x128xbf16, #tpu.memory_space<vmem>>, vector<256x128xbf16>
    %c0_1 = arith.constant 0 : index
    %c0_2 = arith.constant 0 : index
    %1 = vector.load %arg2[%c0_1, %c0_2] : memref<128x128xbf16, #tpu.memory_space<vmem>>, vector<128x128xbf16>
    %cst = arith.constant dense<0.000000e+00> : vector<256x128xf32>
    %2 = tpu.matmul %0, %1, %cst {dimension_numbers = #tpu.dot_dimension_numbers<[1], [0], [0], [1], [0, 0, 1, 1], [], []>} : vector<256x128xbf16>, vector<128x128xbf16>, vector<256x128xf32> -> vector<256x128xf32>
    %c0_3 = arith.constant 0 : index
    %c0_4 = arith.constant 0 : index
    %3 = vector.load %arg3[%c0_3, %c0_4] : memref<1x128xf32, #tpu.memory_space<vmem>>, vector<1x128xf32>
    %4 = vector.broadcast %3 : vector<1x128xf32> to vector<256x128xf32>
    %5 = arith.addf %2, %4 : vector<256x128xf32>
    %cst_5 = arith.constant 0.000000e+00 : f32
    %6 = vector.broadcast %cst_5 : f32 to vector<256x128xf32>
    %7 = arith.maximumf %5, %6 : vector<256x128xf32>
    %8 = arith.truncf %7 : vector<256x128xf32> to vector<256x128xbf16>
    %c0_6 = arith.constant 0 : index
    %c0_7 = arith.constant 0 : index
    %9 = vector.load %arg4[%c0_6, %c0_7] : memref<128x128xbf16, #tpu.memory_space<vmem>>, vector<128x128xbf16>
    %cst_8 = arith.constant dense<0.000000e+00> : vector<256x128xf32>
    %10 = tpu.matmul %8, %9, %cst_8 {dimension_numbers = #tpu.dot_dimension_numbers<[1], [0], [0], [1], [0, 0, 1, 1], [], []>} : vector<256x128xbf16>, vector<128x128xbf16>, vector<256x128xf32> -> vector<256x128xf32>
    %c0_9 = arith.constant 0 : index
    %c0_10 = arith.constant 0 : index
    %11 = vector.load %arg5[%c0_9, %c0_10] : memref<1x128xf32, #tpu.memory_space<vmem>>, vector<1x128xf32>
    %12 = vector.broadcast %11 : vector<1x128xf32> to vector<256x128xf32>
    %13 = arith.addf %10, %12 : vector<256x128xf32>
    %cst_11 = arith.constant 0.000000e+00 : f32
    %14 = vector.broadcast %cst_11 : f32 to vector<256x128xf32>
    %15 = arith.maximumf %13, %14 : vector<256x128xf32>
    %16 = arith.addf %15, %7 : vector<256x128xf32>
    %cst_12 = arith.constant dense<0.000000e+00> : vector<256xf32>
    %17 = vector.multi_reduction <add>, %16, %cst_12 [1] : vector<256x128xf32> to vector<256xf32>
    %18 = vector.shape_cast %17 : vector<256xf32> to vector<256x1xf32>
    %cst_13 = arith.constant 1.280000e+02 : f32
    %19 = vector.broadcast %cst_13 : f32 to vector<256x1xf32>
    %20 = arith.divf %18, %19 : vector<256x1xf32>
    %21 = vector.broadcast %20 : vector<256x1xf32> to vector<256x128xf32>
    %22 = arith.subf %16, %21 : vector<256x128xf32>
    %23 = arith.mulf %22, %22 : vector<256x128xf32>
    %cst_14 = arith.constant dense<0.000000e+00> : vector<256xf32>
    %24 = vector.multi_reduction <add>, %23, %cst_14 [1] : vector<256x128xf32> to vector<256xf32>
    %25 = vector.shape_cast %24 : vector<256xf32> to vector<256x1xf32>
    %cst_15 = arith.constant 1.280000e+02 : f32
    %26 = vector.broadcast %cst_15 : f32 to vector<256x1xf32>
    %27 = arith.divf %25, %26 : vector<256x1xf32>
    %cst_16 = arith.constant 9.99999974E-6 : f32
    %28 = vector.broadcast %cst_16 : f32 to vector<256x1xf32>
    %29 = arith.addf %27, %28 : vector<256x1xf32>
    %30 = math.rsqrt %29 : vector<256x1xf32>
    %31 = vector.broadcast %30 : vector<256x1xf32> to vector<256x128xf32>
    %32 = arith.mulf %22, %31 : vector<256x128xf32>
    %c0_17 = arith.constant 0 : index
    %c0_18 = arith.constant 0 : index
    %33 = vector.load %arg6[%c0_17, %c0_18] : memref<1x128xf32, #tpu.memory_space<vmem>>, vector<1x128xf32>
    %34 = vector.broadcast %33 : vector<1x128xf32> to vector<256x128xf32>
    %35 = arith.mulf %32, %34 : vector<256x128xf32>
    %c0_19 = arith.constant 0 : index
    %c0_20 = arith.constant 0 : index
    %36 = vector.load %arg7[%c0_19, %c0_20] : memref<1x128xf32, #tpu.memory_space<vmem>>, vector<1x128xf32>
    %37 = vector.broadcast %36 : vector<1x128xf32> to vector<256x128xf32>
    %38 = arith.addf %35, %37 : vector<256x128xf32>
    %39 = arith.truncf %38 : vector<256x128xf32> to vector<256x128xbf16>
    %c0_21 = arith.constant 0 : index
    %c0_22 = arith.constant 0 : index
    %40 = vector.load %arg8[%c0_21, %c0_22] : memref<256x128xbf16, #tpu.memory_space<vmem>>, vector<256x128xbf16>
    tpu.vector_store %arg8[%c0_21, %c0_22], %39 {strides = array<i32>} : memref<256x128xbf16, #tpu.memory_space<vmem>>, vector<256x128xbf16>,
    return
  }
  func.func @transform_0(%arg0: i32) -> (i32, i32) {
    %c0_i32 = arith.constant 0 : i32
    %c0_i32_0 = arith.constant 0 : i32
    return %arg0, %c0_i32 : i32, i32
  }
  func.func @transform_1(%arg0: i32) -> (i32, i32) {
    %c0_i32 = arith.constant 0 : i32
    %c0_i32_0 = arith.constant 0 : i32
    %c0_i32_1 = arith.constant 0 : i32
    return %c0_i32, %c0_i32_0 : i32, i32
  }
  func.func @transform_2(%arg0: i32) -> (i32, i32) {
    %c0_i32 = arith.constant 0 : i32
    %c0_i32_0 = arith.constant 0 : i32
    %c0_i32_1 = arith.constant 0 : i32
    return %c0_i32, %c0_i32_0 : i32, i32
  }
  func.func @transform_3(%arg0: i32) -> (i32, i32) {
    %c0_i32 = arith.constant 0 : i32
    %c0_i32_0 = arith.constant 0 : i32
    %c0_i32_1 = arith.constant 0 : i32
    return %c0_i32, %c0_i32_0 : i32, i32
  }
  func.func @transform_4(%arg0: i32) -> (i32, i32) {
    %c0_i32 = arith.constant 0 : i32
    %c0_i32_0 = arith.constant 0 : i32
    %c0_i32_1 = arith.constant 0 : i32
    return %c0_i32, %c0_i32_0 : i32, i32
  }
  func.func @transform_5(%arg0: i32) -> (i32, i32) {
    %c0_i32 = arith.constant 0 : i32
    %c0_i32_0 = arith.constant 0 : i32
    %c0_i32_1 = arith.constant 0 : i32
    return %c0_i32, %c0_i32_0 : i32, i32
  }
  func.func @transform_6(%arg0: i32) -> (i32, i32) {
    %c0_i32 = arith.constant 0 : i32
    %c0_i32_0 = arith.constant 0 : i32
    %c0_i32_1 = arith.constant 0 : i32
    return %c0_i32, %c0_i32_0 : i32, i32
  }
  func.func @transform_7(%arg0: i32) -> (i32, i32) {
    %c0_i32 = arith.constant 0 : i32
    %c0_i32_0 = arith.constant 0 : i32
    return %arg0, %c0_i32 : i32, i32
  }
}

</mosaic_0001>

<llo_original>
// kernel: tpu_custom_call.1
$region0: #{tpu_custom_call.1}
  #allocation0 [shape = 'u32[]', space=smem, size = 0x4, offset = 0x4, fixed_abs, tag = 'smem constant byte address 0x4 - core index']
  #allocation1 [shape = 'u32[144,128]{1,0:T(1,128)}', space=vmem, size = 0x12000, scoped, tag = 'internal scratch']
  %s0 = inlined_call_operand.hbm [shape: bf16[1000,128], index: 0, kind: input, shape index: {}]
  %s1 = inlined_call_operand.hbm [shape: bf16[128,128], index: 1, kind: input, shape index: {}]
  %s2 = inlined_call_operand.vmem [shape: f32[1,128], index: 2, kind: input, shape index: {}]
  %s3 = inlined_call_operand.hbm [shape: bf16[128,128], index: 3, kind: input, shape index: {}]
  %s4 = inlined_call_operand.vmem [shape: f32[1,128], index: 4, kind: input, shape index: {}]
  %s5 = inlined_call_operand.vmem [shape: f32[1,128], index: 5, kind: input, shape index: {}]
  %s6 = inlined_call_operand.vmem [shape: f32[1,128], index: 6, kind: input, shape index: {}]
  %s7 = inlined_call_operand.hbm [shape: bf16[1000,128], index: 7, kind: output, shape index: {}]
  %s8 = sld [smem:[#allocation0]]
  $region73: #{tpu_custom_call.1} parent=0
    _
  %s10 = ssub.s32 1, %s8
  %s11 = scalar_select 0, %s10, %s8
  $region1: #{tpu_custom_call.1} parent=0
    #allocation2 [shape = 'u8[131072]{0}', space=vmem, size = 0x20000, scoped, tag = 'input window, operand 0']
    #allocation3 [shape = 's32[2]{0}', space=sflag, size = 0x8, scoped, tag = 'scoped memory for tpu_custom_call.1']
    #allocation4 [shape = 's32[2]{0}', space=sflag, size = 0x8, scoped, tag = 'scoped memory for tpu_custom_call.1']
    #allocation5 [shape = 'u8[32768]{0}', space=vmem, size = 0x8000, scoped, tag = 'input window, operand 1, single buffered']
    #allocation6 [shape = 's32[1]{0}', space=sflag, size = 0x4, scoped, tag = 'scoped memory for tpu_custom_call.1']
    #allocation7 [shape = 'u8[32768]{0}', space=vmem, size = 0x8000, scoped, tag = 'input window, operand 3, single buffered']
    #allocation8 [shape = 'u8[131072]{0}', space=vmem, size = 0x20000, scoped, tag = 'output window, operand 0']
    %12 = vsyncpa [#allocation3], 0
    %s13 = scalar_lea.sflag [#allocation3], 1
    %14 = vsyncpa %s13, 0
    %15 = vsyncpa [#allocation6], 0
    %16 = vsyncpa [#allocation4], 0
    %s17 = scalar_lea.sflag [#allocation4], 1
    %18 = vsyncpa %s17, 0
    loop: start=0, step=1, limit=6
    $region2: #{tpu_custom_call.1} parent=1 // loop_pre_header
      _
    $region3: #{tpu_custom_call.1} parent=1 // loop_header
      %s20 = sphi 0, %s24
      %p21 = scmp.ge.s32.totalorder %s20, 6
      %s30 = sphi 0, %s32
      %s33 = sphi 0, %s30
      %s34 = sphi 0, %s33
      %s50 = sphi 0, %s34
      %s54 = sphi 0, %s54
      %s56 = sphi 0, %s54
      %s57 = sphi 0, %s56
      %s71 = sphi 0, %s57
      %s75 = sphi 0, %s75
      %s77 = sphi 0, %s75
      %s78 = sphi 0, %s77
      %s92 = sphi 0, %s78
      %s96 = sphi 0, %s96
      %s98 = sphi 0, %s96
      %s99 = sphi 0, %s98
      %s113 = sphi 0, %s99
      %s117 = sphi 0, %s117
      %s119 = sphi 0, %s117
      %s120 = sphi 0, %s119
      %s134 = sphi 0, %s120
      %s138 = sphi 0, %s138
      %s140 = sphi 0, %s138
      %s141 = sphi 0, %s140
      %s155 = sphi 0, %s141
      %s159 = sphi 0, %s159
      %s161 = sphi 0, %s159
      %s162 = sphi 0, %s161
      %s176 = sphi 0, %s162
      %s182 = sphi 0, %s184
      %s185 = sphi 0, %s182
      %s186 = sphi 0, %s185
      %s202 = sphi 0, %s186
    $region4: #{tpu_custom_call.1} parent=1 // loop_header_branch
      %23 = sbr.rel (%p21) target = $region8
    $region5: #{tpu_custom_call.1} parent=1 // loop_body
      %s25 = ssub.s32 %s20, 1
      %s26 = ssub.s32 %s20, 2
      %s27 = sadd.s32 %s20, 1
      %s28 = ssub.s32 %s20, %s27
      %p29 = scmp.eq.s32.totalorder %s28, 0
      %s31 = sadd.s32 %s30, 1
      %s32 = scalar_select %p29, %s30, %s31
      %p35 = pneg %p29
      %p36 = scmp.eq.s32.totalorder %s20, 3
      %p37 = por %p35, %p36
      %p38 = scmp.ne.s32.totalorder %s30, %s33
      %p39 = scmp.eq.s32.totalorder %s20, 0
      %p40 = por %p38, %p39
      %p41 = scmp.ne.s32.totalorder %s30, %s33
      %p42 = scmp.eq.s32.totalorder %s25, 3
      %p43 = por %p41, %p42
      %p44 = scmp.ne.s32.totalorder %s33, %s34
      %p45 = scmp.eq.s32.totalorder %s25, 0
      %p46 = por %p44, %p45
      %p47 = scmp.ne.s32.totalorder %s33, %s34
      %p48 = scmp.eq.s32.totalorder %s26, 3
      %p49 = por %p47, %p48
      %p51 = scmp.ne.s32.totalorder %s34, %s50
      %p52 = scmp.eq.s32.totalorder %s26, 0
      %p53 = por %p51, %p52
      %s55 = sadd.s32 %s54, 1
      %p58 = scmp.eq.s32.totalorder %s20, 3
      %p59 = scmp.ne.s32.totalorder %s54, %s56
      %p60 = scmp.eq.s32.totalorder %s20, 0
      %p61 = por %p59, %p60
      %p62 = scmp.ne.s32.totalorder %s54, %s56
      %p63 = scmp.eq.s32.totalorder %s25, 3
      %p64 = por %p62, %p63
      %p65 = scmp.ne.s32.totalorder %s56, %s57
      %p66 = scmp.eq.s32.totalorder %s25, 0
      %p67 = por %p65, %p66
      %p68 = scmp.ne.s32.totalorder %s56, %s57
      %p69 = scmp.eq.s32.totalorder %s26, 3
      %p70 = por %p68, %p69
      %p72 = scmp.ne.s32.totalorder %s57, %s71
      %p73 = scmp.eq.s32.totalorder %s26, 0
      %p74 = por %p72, %p73
      %s76 = sadd.s32 %s75, 1
      %p79 = scmp.eq.s32.totalorder %s20, 3
      %p80 = scmp.ne.s32.totalorder %s75, %s77
      %p81 = scmp.eq.s32.totalorder %s20, 0
      %p82 = por %p80, %p81
      %p83 = scmp.ne.s32.totalorder %s75, %s77
      %p84 = scmp.eq.s32.totalorder %s25, 3
      %p85 = por %p83, %p84
      %p86 = scmp.ne.s32.totalorder %s77, %s78
      %p87 = scmp.eq.s32.totalorder %s25, 0
      %p88 = por %p86, %p87
      %p89 = scmp.ne.s32.totalorder %s77, %s78
      %p90 = scmp.eq.s32.totalorder %s26, 3
      %p91 = por %p89, %p90
      %p93 = scmp.ne.s32.totalorder %s78, %s92
      %p94 = scmp.eq.s32.totalorder %s26, 0
      %p95 = por %p93, %p94
      %s97 = sadd.s32 %s96, 1
      %p100 = scmp.eq.s32.totalorder %s20, 3
      %p101 = scmp.ne.s32.totalorder %s96, %s98
      %p102 = scmp.eq.s32.totalorder %s20, 0
      %p103 = por %p101, %p102
      %p104 = scmp.ne.s32.totalorder %s96, %s98
      %p105 = scmp.eq.s32.totalorder %s25, 3
      %p106 = por %p104, %p105
      %p107 = scmp.ne.s32.totalorder %s98, %s99
      %p108 = scmp.eq.s32.totalorder %s25, 0
      %p109 = por %p107, %p108
      %p110 = scmp.ne.s32.totalorder %s98, %s99
      %p111 = scmp.eq.s32.totalorder %s26, 3
      %p112 = por %p110, %p111
      %p114 = scmp.ne.s32.totalorder %s99, %s113
      %p115 = scmp.eq.s32.totalorder %s26, 0
      %p116 = por %p114, %p115
      %s118 = sadd.s32 %s117, 1
      %p121 = scmp.eq.s32.totalorder %s20, 3
      %p122 = scmp.ne.s32.totalorder %s117, %s119
      %p123 = scmp.eq.s32.totalorder %s20, 0
      %p124 = por %p122, %p123
      %p125 = scmp.ne.s32.totalorder %s117, %s119
      %p126 = scmp.eq.s32.totalorder %s25, 3
      %p127 = por %p125, %p126
      %p128 = scmp.ne.s32.totalorder %s119, %s120
      %p129 = scmp.eq.s32.totalorder %s25, 0
      %p130 = por %p128, %p129
      %p131 = scmp.ne.s32.totalorder %s119, %s120
      %p132 = scmp.eq.s32.totalorder %s26, 3
      %p133 = por %p131, %p132
      %p135 = scmp.ne.s32.totalorder %s120, %s134
      %p136 = scmp.eq.s32.totalorder %s26, 0
      %p137 = por %p135, %p136
      %s139 = sadd.s32 %s138, 1
      %p142 = scmp.eq.s32.totalorder %s20, 3
      %p143 = scmp.ne.s32.totalorder %s138, %s140
      %p144 = scmp.eq.s32.totalorder %s20, 0
      %p145 = por %p143, %p144
      %p146 = scmp.ne.s32.totalorder %s138, %s140
      %p147 = scmp.eq.s32.totalorder %s25, 3
      %p148 = por %p146, %p147
      %p149 = scmp.ne.s32.totalorder %s140, %s141
      %p150 = scmp.eq.s32.totalorder %s25, 0
      %p151 = por %p149, %p150
      %p152 = scmp.ne.s32.totalorder %s140, %s141
      %p153 = scmp.eq.s32.totalorder %s26, 3
      %p154 = por %p152, %p153
      %p156 = scmp.ne.s32.totalorder %s141, %s155
      %p157 = scmp.eq.s32.totalorder %s26, 0
      %p158 = por %p156, %p157
      %s160 = sadd.s32 %s159, 1
      %p163 = scmp.eq.s32.totalorder %s20, 3
      %p164 = scmp.ne.s32.totalorder %s159, %s161
      %p165 = scmp.eq.s32.totalorder %s20, 0
      %p166 = por %p164, %p165
      %p167 = scmp.ne.s32.totalorder %s159, %s161
      %p168 = scmp.eq.s32.totalorder %s25, 3
      %p169 = por %p167, %p168
      %p170 = scmp.ne.s32.totalorder %s161, %s162
      %p171 = scmp.eq.s32.totalorder %s25, 0
      %p172 = por %p170, %p171
      %p173 = scmp.ne.s32.totalorder %s161, %s162
      %p174 = scmp.eq.s32.totalorder %s26, 3
      %p175 = por %p173, %p174
      %p177 = scmp.ne.s32.totalorder %s162, %s176
      %p178 = scmp.eq.s32.totalorder %s26, 0
      %p179 = por %p177, %p178
      %s180 = ssub.s32 %s20, %s27
      %p181 = scmp.eq.s32.totalorder %s180, 0
      %s183 = sadd.s32 %s182, 1
      %s184 = scalar_select %p181, %s182, %s183
      %p187 = pneg %p181
      %p188 = scmp.eq.s32.totalorder %s20, 3
      %p189 = por %p187, %p188
      %p190 = scmp.ne.s32.totalorder %s182, %s185
      %p191 = scmp.eq.s32.totalorder %s20, 0
      %p192 = por %p190, %p191
      %p193 = scmp.ne.s32.totalorder %s182, %s185
      %p194 = scmp.eq.s32.totalorder %s25, 3
      %p195 = por %p193, %p194
      %p196 = scmp.ne.s32.totalorder %s185, %s186
      %p197 = scmp.eq.s32.totalorder %s25, 0
      %p198 = por %p196, %p197
      %p199 = scmp.ne.s32.totalorder %s185, %s186
      %p200 = scmp.eq.s32.totalorder %s26, 3
      %p201 = por %p199, %p200
      %p203 = scmp.ne.s32.totalorder %s186, %s202
      %p204 = scmp.eq.s32.totalorder %s26, 0
      %p205 = por %p203, %p204
      %p206 = scmp.le.s32.totalorder 1, %s20
      %p207 = scmp.lt.s32.totalorder %s20, 5
      %p208 = pnand %p206, %p207
      %p209 = pneg %p208
      // Predicated region
      $region9: #{tpu_custom_call.1} parent=5 // pred_check
        _
      $region10: #{tpu_custom_call.1} parent=5 // pred_check_branch
        %211 = sbr.rel (%p208) target = $region12
      $region11: #{tpu_custom_call.1} parent=5 // pred_region
        %s212 = ssub.s32 %s20, 1
        // Predicated region
        $region13: #{tpu_custom_call.1} parent=11 // pred_check
          %p213 = pneg %p67
        $region14: #{tpu_custom_call.1} parent=11 // pred_check_branch
          %215 = sbr.rel (%p213) target = $region16
        $region15: #{tpu_custom_call.1} parent=11 // pred_region
          %s217 = ssub.s32 1024, 1024
          %218 = vsyncadd [#allocation6], %s217
          %s219 = sshll.u32 [#allocation5], 4
          %s220 = int_to_ptr.vmem [resolvable:$true] %s219
          %225 = dma.hbm_to_vmem [thread:$0]  %s1, 1024, %s220, [#allocation6], 64, 64, 4
        $region16: #{tpu_custom_call.1} parent=11 // pred_fallthru
          _
        // Predicated region
        $region17: #{tpu_custom_call.1} parent=11 // pred_check
          %p226 = pneg %p88
        $region18: #{tpu_custom_call.1} parent=11 // pred_check_branch
          %228 = sbr.rel (%p226) target = $region20
        $region19: #{tpu_custom_call.1} parent=11 // pred_region
          _
        $region20: #{tpu_custom_call.1} parent=11 // pred_fallthru
          _
        // Predicated region
        $region21: #{tpu_custom_call.1} parent=11 // pred_check
          %p229 = pneg %p109
        $region22: #{tpu_custom_call.1} parent=11 // pred_check_branch
          %231 = sbr.rel (%p229) target = $region24
        $region23: #{tpu_custom_call.1} parent=11 // pred_region
          %s233 = ssub.s32 1024, 1024
          %234 = vsyncadd [#allocation6], %s233
          %s235 = sshll.u32 [#allocation7], 4
          %s236 = int_to_ptr.vmem [resolvable:$true] %s235
          %241 = dma.hbm_to_vmem [thread:$0]  %s3, 1024, %s236, [#allocation6], 64, 64, 4
        $region24: #{tpu_custom_call.1} parent=11 // pred_fallthru
          _
        // Predicated region
        $region25: #{tpu_custom_call.1} parent=11 // pred_check
          %p242 = pneg %p130
        $region26: #{tpu_custom_call.1} parent=11 // pred_check_branch
          %244 = sbr.rel (%p242) target = $region28
        $region27: #{tpu_custom_call.1} parent=11 // pred_region
          _
        $region28: #{tpu_custom_call.1} parent=11 // pred_fallthru
          _
        // Predicated region
        $region29: #{tpu_custom_call.1} parent=11 // pred_check
          %p245 = pneg %p151
        $region30: #{tpu_custom_call.1} parent=11 // pred_check_branch
          %247 = sbr.rel (%p245) target = $region32
        $region31: #{tpu_custom_call.1} parent=11 // pred_region
          _
        $region32: #{tpu_custom_call.1} parent=11 // pred_fallthru
          _
        // Predicated region
        $region33: #{tpu_custom_call.1} parent=11 // pred_check
          %p248 = pneg %p172
        $region34: #{tpu_custom_call.1} parent=11 // pred_check_branch
          %250 = sbr.rel (%p248) target = $region36
        $region35: #{tpu_custom_call.1} parent=11 // pred_region
          _
        $region36: #{tpu_custom_call.1} parent=11 // pred_fallthru
          _
      $region12: #{tpu_custom_call.1} parent=5 // pred_fallthru
        _
      %p251 = scmp.lt.s32.totalorder %s20, 4
      // Predicated region
      $region37: #{tpu_custom_call.1} parent=5 // pred_check
        %p252 = pneg %p251
      $region38: #{tpu_custom_call.1} parent=5 // pred_check_branch
        %254 = sbr.rel (%p252) target = $region40
      $region39: #{tpu_custom_call.1} parent=5 // pred_region
        // Predicated region
        $region41: #{tpu_custom_call.1} parent=39 // pred_check
          %p255 = pneg %p40
        $region42: #{tpu_custom_call.1} parent=39 // pred_check_branch
          %257 = sbr.rel (%p255) target = $region44
        $region43: #{tpu_custom_call.1} parent=39 // pred_region
          %s258 = sand.u32 %s30, 1
          %s259 = scalar_lea.sflag [#allocation3], %s258
          %s260 = sand.u32 %s30, 1
          %s261 = smul.addr %s260, 128
          %s262 = scalar_lea.vmem [#allocation2], %s261
          %s263 = smul.u32 32, %s20
          %s264 = ssub.s32 125, %s263
          %p265 = scmp.lt.s32.totalorder %s264, 32
          %s266 = scalar_select %p265, %s264, 32
          %s267 = smul.u32 64, %s266
          %s269 = ssub.s32 2048, %s267
          %270 = vsyncadd %s259, %s269
          %p271 = scmp.ne.s32.totalorder 0, %s267
          %s272 = smul.addr %s263, 64
          %s273 = scalar_lea.hbm %s0, %s272
          %s274 = smul.u32 4, %s266
          %s275 = sshll.u32 %s262, 4
          %s276 = int_to_ptr.vmem [resolvable:$true] %s275
          %s277 = sshll.u32 %s274, 4
          %281 = dma.hbm_to_vmem [thread:$0]  (%p271), %s273, %s277, %s276, %s259, 64, 64, 4
        $region44: #{tpu_custom_call.1} parent=39 // pred_fallthru
          _
      $region40: #{tpu_custom_call.1} parent=5 // pred_fallthru
        _
      %p282 = scmp.le.s32.totalorder 1, %s20
      %p283 = scmp.lt.s32.totalorder %s20, 5
      %p284 = pnand %p282, %p283
      %p285 = pneg %p284
      // Predicated region
      $region45: #{tpu_custom_call.1} parent=5 // pred_check
        _
      $region46: #{tpu_custom_call.1} parent=5 // pred_check_branch
        %287 = sbr.rel (%p284) target = $region48
      $region47: #{tpu_custom_call.1} parent=5 // pred_region
        %s288 = ssub.s32 %s20, 1
        %s289 = sand.u32 %s33, 1
        %s290 = scalar_lea.sflag [#allocation3], %s289
        %s291 = sand.u32 %s33, 1
        %s292 = smul.addr %s291, 128
        %s293 = scalar_lea.vmem [#allocation2], %s292
        // Predicated region
        $region49: #{tpu_custom_call.1} parent=47 // pred_check
          %p294 = pneg %p46
        $region50: #{tpu_custom_call.1} parent=47 // pred_check_branch
          %296 = sbr.rel (%p294) target = $region52
        $region51: #{tpu_custom_call.1} parent=47 // pred_region
          %297 = dma.done %s290, 2048
        $region52: #{tpu_custom_call.1} parent=47 // pred_fallthru
          _
        // Predicated region
        $region53: #{tpu_custom_call.1} parent=47 // pred_check
          %p298 = pneg %p67
        $region54: #{tpu_custom_call.1} parent=47 // pred_check_branch
          %300 = sbr.rel (%p298) target = $region56
        $region55: #{tpu_custom_call.1} parent=47 // pred_region
          %301 = dma.done [#allocation6], 1024
        $region56: #{tpu_custom_call.1} parent=47 // pred_fallthru
          _
        // Predicated region
        $region57: #{tpu_custom_call.1} parent=47 // pred_check
          %p302 = pneg %p109
        $region58: #{tpu_custom_call.1} parent=47 // pred_check_branch
          %304 = sbr.rel (%p302) target = $region60
        $region59: #{tpu_custom_call.1} parent=47 // pred_region
          %305 = dma.done [#allocation6], 1024
        $region60: #{tpu_custom_call.1} parent=47 // pred_fallthru
          _
        %s306 = sand.u32 %s33, 1
        %s307 = scalar_lea.sflag [#allocation3], %s306
        %s308 = sand.u32 %s33, 1
        %s309 = smul.addr %s308, 128
        %s310 = scalar_lea.vmem [#allocation2], %s309
        %p311 = pneg %p46
        %p312 = pneg %p43
        %p313 = pneg %p67
        %p314 = pneg %p64
        %p315 = pneg %p88
        %p316 = pneg %p85
        %p317 = pneg %p109
        %p318 = pneg %p106
        %p319 = pneg %p130
        %p320 = pneg %p127
        %p321 = pneg %p151
        %p322 = pneg %p148
        %p323 = pneg %p172
        %p324 = pneg %p169
        %p325 = pneg %p198
        %p326 = pneg %p195
        %s327 = sand.u32 %s185, 1
        %s328 = scalar_lea.sflag [#allocation4], %s327
        %s329 = sand.u32 %s185, 1
        %s330 = smul.addr %s329, 128
        %s331 = scalar_lea.vmem [#allocation8], %s330
        %s332 = smul.u32 32, %s25
        %s333 = ssub.s32 125, %s332
        %p334 = scmp.lt.s32.totalorder %s333, 32
        %s335 = scalar_select %p334, %s333, 32
        %s336 = smul.u32 64, %s335
        %s337 = smul.u32 32, %s25
        %s338 = ssub.s32 125, %s337
        %p339 = scmp.lt.s32.totalorder %s338, 32
        %s340 = scalar_select %p339, %s338, 32
        %s341 = smul.u32 64, %s340
        %v343 = vld [vmem:[%s293] sm:$0xf]
        %v344 = vld [vmem:[%s293 + $0x4] sm:$0xf]
        %v345 = vld [vmem:[%s293 + $0x8] sm:$0xf]
        %v346 = vld [vmem:[%s293 + $0xc] sm:$0xf]
        %v347 = vld [vmem:[%s293 + $0x10] sm:$0xf]
        %v348 = vld [vmem:[%s293 + $0x14] sm:$0xf]
        %v349 = vld [vmem:[%s293 + $0x18] sm:$0xf]
        %v350 = vld [vmem:[%s293 + $0x1c] sm:$0xf]
        %v351 = vld [vmem:[%s293 + $0x20] sm:$0xf]
        %v352 = vld [vmem:[%s293 + $0x24] sm:$0xf]
        %v353 = vld [vmem:[%s293 + $0x28] sm:$0xf]
        %v354 = vld [vmem:[%s293 + $0x2c] sm:$0xf]
        %v355 = vld [vmem:[%s293 + $0x30] sm:$0xf]
        %v356 = vld [vmem:[%s293 + $0x34] sm:$0xf]
        %v357 = vld [vmem:[%s293 + $0x38] sm:$0xf]
        %v358 = vld [vmem:[%s293 + $0x3c] sm:$0xf]
        %v359 = vld [vmem:[%s293 + $0x40] sm:$0xf]
        %v360 = vld [vmem:[%s293 + $0x44] sm:$0xf]
        %v361 = vld [vmem:[%s293 + $0x48] sm:$0xf]
        %v362 = vld [vmem:[%s293 + $0x4c] sm:$0xf]
        %v363 = vld [vmem:[%s293 + $0x50] sm:$0xf]
        %v364 = vld [vmem:[%s293 + $0x54] sm:$0xf]
        %v365 = vld [vmem:[%s293 + $0x58] sm:$0xf]
        %v366 = vld [vmem:[%s293 + $0x5c] sm:$0xf]
        %v367 = vld [vmem:[%s293 + $0x60] sm:$0xf]
        %v368 = vld [vmem:[%s293 + $0x64] sm:$0xf]
        %v369 = vld [vmem:[%s293 + $0x68] sm:$0xf]
        %v370 = vld [vmem:[%s293 + $0x6c] sm:$0xf]
        %v371 = vld [vmem:[%s293 + $0x70] sm:$0xf]
        %v372 = vld [vmem:[%s293 + $0x74] sm:$0xf]
        %v373 = vld [vmem:[%s293 + $0x78] sm:$0xf]
        %v374 = vld [vmem:[%s293 + $0x7c] sm:$0xf]
        %v375 = vld [vmem:[#allocation5] sm:$0xf]
        %v376 = vld [vmem:[#allocation5 + $0x4] sm:$0xf]
        %v377 = vld [vmem:[#allocation5 + $0x8] sm:$0xf]
        %v378 = vld [vmem:[#allocation5 + $0xc] sm:$0xf]
        %v379 = vld [vmem:[#allocation5 + $0x10] sm:$0xf]
        %v380 = vld [vmem:[#allocation5 + $0x14] sm:$0xf]
        %v381 = vld [vmem:[#allocation5 + $0x18] sm:$0xf]
        %v382 = vld [vmem:[#allocation5 + $0x1c] sm:$0xf]
        %v383 = vld [vmem:[#allocation5 + $0x20] sm:$0xf]
        %v384 = vld [vmem:[#allocation5 + $0x24] sm:$0xf]
        %v385 = vld [vmem:[#allocation5 + $0x28] sm:$0xf]
        %v386 = vld [vmem:[#allocation5 + $0x2c] sm:$0xf]
        %v387 = vld [vmem:[#allocation5 + $0x30] sm:$0xf]
        %v388 = vld [vmem:[#allocation5 + $0x34] sm:$0xf]
        %v389 = vld [vmem:[#allocation5 + $0x38] sm:$0xf]
        %v390 = vld [vmem:[#allocation5 + $0x3c] sm:$0xf]
        %v391 = vld [vmem:[%s2] sm:$0x1]
        %v393 = vlaneseq
        %v394 = vshrl.u32 %v393, 7
        %v395 = vsub.s32 0, %v394
        %v396 = vrot.slane %v391, %v395
        %v430 = vunpack.c.l.b16 %v343
        %v431 = vunpack.c.l.b16 %v344
        %v432 = vunpack.c.l.b16 %v345
        %v433 = vunpack.c.l.b16 %v346
        %v434 = vunpack.c.l.b16 %v347
        %v435 = vunpack.c.l.b16 %v348
        %v436 = vunpack.c.l.b16 %v349
        %v437 = vunpack.c.l.b16 %v350
        %v438 = vunpack.c.l.b16 %v351
        %v439 = vunpack.c.l.b16 %v352
        %v440 = vunpack.c.l.b16 %v353
        %v441 = vunpack.c.l.b16 %v354
        %v442 = vunpack.c.l.b16 %v355
        %v443 = vunpack.c.l.b16 %v356
        %v444 = vunpack.c.l.b16 %v357
        %v445 = vunpack.c.l.b16 %v358
        %v446 = vunpack.c.l.b16 %v359
        %v447 = vunpack.c.l.b16 %v360
        %v448 = vunpack.c.l.b16 %v361
        %v449 = vunpack.c.l.b16 %v362
        %v450 = vunpack.c.l.b16 %v363
        %v451 = vunpack.c.l.b16 %v364
        %v452 = vunpack.c.l.b16 %v365
        %v453 = vunpack.c.l.b16 %v366
        %v454 = vunpack.c.l.b16 %v367
        %v455 = vunpack.c.l.b16 %v368
        %v456 = vunpack.c.l.b16 %v369
        %v457 = vunpack.c.l.b16 %v370
        %v458 = vunpack.c.l.b16 %v371
        %v459 = vunpack.c.l.b16 %v372
        %v460 = vunpack.c.l.b16 %v373
        %v461 = vunpack.c.l.b16 %v374
        %v462 = vpack.c.b16 %v431, %v430
        %v463 = vpack.c.b16 %v433, %v432
        %v464 = vpack.c.b16 %v435, %v434
        %v465 = vpack.c.b16 %v437, %v436
        %v466 = vpack.c.b16 %v439, %v438
        %v467 = vpack.c.b16 %v441, %v440
        %v468 = vpack.c.b16 %v443, %v442
        %v469 = vpack.c.b16 %v445, %v444
        %v470 = vpack.c.b16 %v447, %v446
        %v471 = vpack.c.b16 %v449, %v448
        %v472 = vpack.c.b16 %v451, %v450
        %v473 = vpack.c.b16 %v453, %v452
        %v474 = vpack.c.b16 %v455, %v454
        %v475 = vpack.c.b16 %v457, %v456
        %v476 = vpack.c.b16 %v459, %v458
        %v477 = vpack.c.b16 %v461, %v460
        %v510 = vunpack.c.l.b16 %v375
        %v511 = vunpack.c.l.b16 %v376
        %v512 = vunpack.c.l.b16 %v377
        %v513 = vunpack.c.l.b16 %v378
        %v514 = vunpack.c.l.b16 %v379
        %v515 = vunpack.c.l.b16 %v380
        %v516 = vunpack.c.l.b16 %v381
        %v517 = vunpack.c.l.b16 %v382
        %v518 = vunpack.c.l.b16 %v383
        %v519 = vunpack.c.l.b16 %v384
        %v520 = vunpack.c.l.b16 %v385
        %v521 = vunpack.c.l.b16 %v386
        %v522 = vunpack.c.l.b16 %v387
        %v523 = vunpack.c.l.b16 %v388
        %v524 = vunpack.c.l.b16 %v389
        %v525 = vunpack.c.l.b16 %v390
        %v526 = vpack.c.b16 %v511, %v510
        %v527 = vpack.c.b16 %v513, %v512
        %v528 = vpack.c.b16 %v515, %v514
        %v529 = vpack.c.b16 %v517, %v516
        %v530 = vpack.c.b16 %v519, %v518
        %v531 = vpack.c.b16 %v521, %v520
        %v532 = vpack.c.b16 %v523, %v522
        %v533 = vpack.c.b16 %v525, %v524
        %542 = vmatprep.subr.bf16.mxu0 0
        %543 = vmatpush1.bf16.msra.mxu0 %v533
        %544 = vmatprep.subr.bf16.mxu0 0
        %545 = vmatpush1.bf16.msra.mxu0 %v532
        %546 = vmatprep.subr.bf16.mxu0 0
        %547 = vmatpush1.bf16.msra.mxu0 %v531
        %548 = vmatprep.subr.bf16.mxu0 0
        %549 = vmatpush1.bf16.msra.mxu0 %v530
        %550 = vmatprep.subr.bf16.mxu0 0
        %551 = vmatpush1.bf16.msra.mxu0 %v529
        %552 = vmatprep.subr.bf16.mxu0 0
        %553 = vmatpush1.bf16.msra.mxu0 %v528
        %554 = vmatprep.subr.bf16.mxu0 0
        %555 = vmatpush1.bf16.msra.mxu0 %v527
        %556 = vmatprep.subr.bf16.mxu0 0
        %557 = vmatpush1.bf16.msra.mxu0 %v526
        %558 = vmatprep.subr.bf16.mxu0 0
        %559 = vmatpush2.bf16.msra.mxu0 0
        %560 = vmatprep.subr.bf16.mxu0 0
        %561 = vmatpush2.bf16.msra.mxu0 0
        %562 = vmatprep.subr.bf16.mxu0 0
        %563 = vmatpush2.bf16.msra.mxu0 0
        %564 = vmatprep.subr.bf16.mxu0 0
        %565 = vmatpush2.bf16.msra.mxu0 0
        %566 = vmatprep.subr.bf16.mxu0 0
        %567 = vmatpush2.bf16.msra.mxu0 0
        %568 = vmatprep.subr.bf16.mxu0 0
        %569 = vmatpush2.bf16.msra.mxu0 0
        %570 = vmatprep.subr.bf16.mxu0 0
        %571 = vmatpush2.bf16.msra.mxu0 0
        %572 = vmatprep.subr.bf16.mxu0 0
        %573 = vmatpush2.bf16.msra.mxu0 0
        %574 = vmatprep.mubr.bf16.mxu0 0
        %575 = vmatmul.mubr.bf16.gmra.mxu0 %v462
        %v576 = vpop.f32.mrf.mxu0
        %v577 = vadd.f32 %v396, %v576
        %v578 = vpop.f32.mrf.mxu0
        %v579 = vpop.f32.mrf.mxu0
        %v580 = vadd.f32 %v396, %v579
        %v581 = vpop.f32.mrf.mxu0
        %582 = vmatprep.mubr.bf16.mxu0 0
        %583 = vmatmul.mubr.bf16.gmra.mxu0 %v463
        %v584 = vpop.f32.mrf.mxu0
        %v585 = vadd.f32 %v396, %v584
        %v586 = vpop.f32.mrf.mxu0
        %v587 = vpop.f32.mrf.mxu0
        %v588 = vadd.f32 %v396, %v587
        %v589 = vpop.f32.mrf.mxu0
        %590 = vmatprep.mubr.bf16.mxu0 0
        %591 = vmatmul.mubr.bf16.gmra.mxu0 %v464
        %v592 = vpop.f32.mrf.mxu0
        %v593 = vadd.f32 %v396, %v592
        %v594 = vpop.f32.mrf.mxu0
        %v595 = vpop.f32.mrf.mxu0
        %v596 = vadd.f32 %v396, %v595
        %v597 = vpop.f32.mrf.mxu0
        %598 = vmatprep.mubr.bf16.mxu0 0
        %599 = vmatmul.mubr.bf16.gmra.mxu0 %v465
        %v600 = vpop.f32.mrf.mxu0
        %v601 = vadd.f32 %v396, %v600
        %v602 = vpop.f32.mrf.mxu0
        %v603 = vpop.f32.mrf.mxu0
        %v604 = vadd.f32 %v396, %v603
        %v605 = vpop.f32.mrf.mxu0
        %606 = vmatprep.mubr.bf16.mxu0 0
        %607 = vmatmul.mubr.bf16.gmra.mxu0 %v466
        %v608 = vpop.f32.mrf.mxu0
        %v609 = vadd.f32 %v396, %v608
        %v610 = vpop.f32.mrf.mxu0
        %v611 = vpop.f32.mrf.mxu0
        %v612 = vadd.f32 %v396, %v611
        %v613 = vpop.f32.mrf.mxu0
        %614 = vmatprep.mubr.bf16.mxu0 0
        %615 = vmatmul.mubr.bf16.gmra.mxu0 %v467
        %v616 = vpop.f32.mrf.mxu0
        %v617 = vadd.f32 %v396, %v616
        %v618 = vpop.f32.mrf.mxu0
        %v619 = vpop.f32.mrf.mxu0
        %v620 = vadd.f32 %v396, %v619
        %v621 = vpop.f32.mrf.mxu0
        %622 = vmatprep.mubr.bf16.mxu0 0
        %623 = vmatmul.mubr.bf16.gmra.mxu0 %v468
        %v624 = vpop.f32.mrf.mxu0
        %v625 = vadd.f32 %v396, %v624
        %v626 = vpop.f32.mrf.mxu0
        %v627 = vpop.f32.mrf.mxu0
        %v628 = vadd.f32 %v396, %v627
        %v629 = vpop.f32.mrf.mxu0
        %630 = vmatprep.mubr.bf16.mxu0 0
        %631 = vmatmul.mubr.bf16.gmra.mxu0 %v469
        %v632 = vpop.f32.mrf.mxu0
        %v633 = vadd.f32 %v396, %v632
        %v634 = vpop.f32.mrf.mxu0
        %v635 = vpop.f32.mrf.mxu0
        %v636 = vadd.f32 %v396, %v635
        %v637 = vpop.f32.mrf.mxu0
        %638 = vmatprep.mubr.bf16.mxu0 0
        %639 = vmatmul.mubr.bf16.gmra.mxu0 %v470
        %v640 = vpop.f32.mrf.mxu0
        %v641 = vadd.f32 %v396, %v640
        %v642 = vpop.f32.mrf.mxu0
        %v643 = vpop.f32.mrf.mxu0
        %v644 = vadd.f32 %v396, %v643
        %v645 = vpop.f32.mrf.mxu0
        %646 = vmatprep.mubr.bf16.mxu0 0
        %647 = vmatmul.mubr.bf16.gmra.mxu0 %v471
        %v648 = vpop.f32.mrf.mxu0
        %v649 = vadd.f32 %v396, %v648
        %v650 = vpop.f32.mrf.mxu0
        %v651 = vpop.f32.mrf.mxu0
        %v652 = vadd.f32 %v396, %v651
        %v653 = vpop.f32.mrf.mxu0
        %654 = vmatprep.mubr.bf16.mxu0 0
        %655 = vmatmul.mubr.bf16.gmra.mxu0 %v472
        %v656 = vpop.f32.mrf.mxu0
        %v657 = vadd.f32 %v396, %v656
        %v658 = vpop.f32.mrf.mxu0
        %v659 = vpop.f32.mrf.mxu0
        %v660 = vadd.f32 %v396, %v659
        %v661 = vpop.f32.mrf.mxu0
        %662 = vmatprep.mubr.bf16.mxu0 0
        %663 = vmatmul.mubr.bf16.gmra.mxu0 %v473
        %v664 = vpop.f32.mrf.mxu0
        %v665 = vadd.f32 %v396, %v664
        %v666 = vpop.f32.mrf.mxu0
        %v667 = vpop.f32.mrf.mxu0
        %v668 = vadd.f32 %v396, %v667
        %v669 = vpop.f32.mrf.mxu0
        %670 = vmatprep.mubr.bf16.mxu0 0
        %671 = vmatmul.mubr.bf16.gmra.mxu0 %v474
        %v672 = vpop.f32.mrf.mxu0
        %v673 = vadd.f32 %v396, %v672
        %v674 = vpop.f32.mrf.mxu0
        %v675 = vpop.f32.mrf.mxu0
        %v676 = vadd.f32 %v396, %v675
        %v677 = vpop.f32.mrf.mxu0
        %678 = vmatprep.mubr.bf16.mxu0 0
        %679 = vmatmul.mubr.bf16.gmra.mxu0 %v475
        %v680 = vpop.f32.mrf.mxu0
        %v681 = vadd.f32 %v396, %v680
        %v682 = vpop.f32.mrf.mxu0
        %v683 = vpop.f32.mrf.mxu0
        %v684 = vadd.f32 %v396, %v683
        %v685 = vpop.f32.mrf.mxu0
        %686 = vmatprep.mubr.bf16.mxu0 0
        %687 = vmatmul.mubr.bf16.gmra.mxu0 %v476
        %v688 = vpop.f32.mrf.mxu0
        %v689 = vadd.f32 %v396, %v688
        %v690 = vpop.f32.mrf.mxu0
        %v691 = vpop.f32.mrf.mxu0
        %v692 = vadd.f32 %v396, %v691
        %v693 = vpop.f32.mrf.mxu0
        %694 = vmatprep.mubr.bf16.mxu0 0
        %695 = vmatmul.mubr.bf16.gmra.mxu0 %v477
        %v696 = vpop.f32.mrf.mxu0
        %v697 = vadd.f32 %v396, %v696
        %v698 = vpop.f32.mrf.mxu0
        %v699 = vpop.f32.mrf.mxu0
        %v700 = vadd.f32 %v396, %v699
        %v701 = vpop.f32.mrf.mxu0
        %702 = vdwg.mxu0
        %v703 = vmax.f32 %v577, 0.0
        %v704 = vmax.f32 %v580, 0.0
        %v705 = vmax.f32 %v585, 0.0
        %v706 = vmax.f32 %v588, 0.0
        %v707 = vmax.f32 %v593, 0.0
        %v708 = vmax.f32 %v596, 0.0
        %v709 = vmax.f32 %v601, 0.0
        %v710 = vmax.f32 %v604, 0.0
        %v711 = vmax.f32 %v609, 0.0
        %v712 = vmax.f32 %v612, 0.0
        %v713 = vmax.f32 %v617, 0.0
        %v714 = vmax.f32 %v620, 0.0
        %v715 = vmax.f32 %v625, 0.0
        %v716 = vmax.f32 %v628, 0.0
        %v717 = vmax.f32 %v633, 0.0
        %v718 = vmax.f32 %v636, 0.0
        %v719 = vmax.f32 %v641, 0.0
        %v720 = vmax.f32 %v644, 0.0
        %v721 = vmax.f32 %v649, 0.0
        %v722 = vmax.f32 %v652, 0.0
        %v723 = vmax.f32 %v657, 0.0
        %v724 = vmax.f32 %v660, 0.0
        %v725 = vmax.f32 %v665, 0.0
        %v726 = vmax.f32 %v668, 0.0
        %v727 = vmax.f32 %v673, 0.0
        %v728 = vmax.f32 %v676, 0.0
        %v729 = vmax.f32 %v681, 0.0
        %v730 = vmax.f32 %v684, 0.0
        %v731 = vmax.f32 %v689, 0.0
        %v732 = vmax.f32 %v692, 0.0
        %v733 = vmax.f32 %v697, 0.0
        %v734 = vmax.f32 %v700, 0.0
        %v735 = vpack.c.bf16 %v704, %v703
        %v736 = vpack.c.bf16 %v706, %v705
        %v737 = vpack.c.bf16 %v708, %v707
        %v738 = vpack.c.bf16 %v710, %v709
        %v739 = vpack.c.bf16 %v712, %v711
        %v740 = vpack.c.bf16 %v714, %v713
        %v741 = vpack.c.bf16 %v716, %v715
        %v742 = vpack.c.bf16 %v718, %v717
        %v743 = vpack.c.bf16 %v720, %v719
        %v744 = vpack.c.bf16 %v722, %v721
        %v745 = vpack.c.bf16 %v724, %v723
        %v746 = vpack.c.bf16 %v726, %v725
        %v747 = vpack.c.bf16 %v728, %v727
        %v748 = vpack.c.bf16 %v730, %v729
        %v749 = vpack.c.bf16 %v732, %v731
        %v750 = vpack.c.bf16 %v734, %v733
        %v751 = vld [vmem:[#allocation7] sm:$0xf]
        %v752 = vld [vmem:[#allocation7 + $0x4] sm:$0xf]
        %v753 = vld [vmem:[#allocation7 + $0x8] sm:$0xf]
        %v754 = vld [vmem:[#allocation7 + $0xc] sm:$0xf]
        %v755 = vld [vmem:[#allocation7 + $0x10] sm:$0xf]
        %v756 = vld [vmem:[#allocation7 + $0x14] sm:$0xf]
        %v757 = vld [vmem:[#allocation7 + $0x18] sm:$0xf]
        %v758 = vld [vmem:[#allocation7 + $0x1c] sm:$0xf]
        %v759 = vld [vmem:[#allocation7 + $0x20] sm:$0xf]
        %v760 = vld [vmem:[#allocation7 + $0x24] sm:$0xf]
        %v761 = vld [vmem:[#allocation7 + $0x28] sm:$0xf]
        %v762 = vld [vmem:[#allocation7 + $0x2c] sm:$0xf]
        %v763 = vld [vmem:[#allocation7 + $0x30] sm:$0xf]
        %v764 = vld [vmem:[#allocation7 + $0x34] sm:$0xf]
        %v765 = vld [vmem:[#allocation7 + $0x38] sm:$0xf]
        %v766 = vld [vmem:[#allocation7 + $0x3c] sm:$0xf]
        %v767 = vld [vmem:[%s4] sm:$0x1]
        %v769 = vlaneseq
        %v770 = vshrl.u32 %v769, 7
        %v771 = vsub.s32 0, %v770
        %v772 = vrot.slane %v767, %v771
        %v790 = vunpack.c.l.b16 %v751
        %v791 = vunpack.c.l.b16 %v752
        %v792 = vunpack.c.l.b16 %v753
        %v793 = vunpack.c.l.b16 %v754
        %v794 = vunpack.c.l.b16 %v755
        %v795 = vunpack.c.l.b16 %v756
        %v796 = vunpack.c.l.b16 %v757
        %v797 = vunpack.c.l.b16 %v758
        %v798 = vunpack.c.l.b16 %v759
        %v799 = vunpack.c.l.b16 %v760
        %v800 = vunpack.c.l.b16 %v761
        %v801 = vunpack.c.l.b16 %v762
        %v802 = vunpack.c.l.b16 %v763
        %v803 = vunpack.c.l.b16 %v764
        %v804 = vunpack.c.l.b16 %v765
        %v805 = vunpack.c.l.b16 %v766
        %v806 = vpack.c.b16 %v791, %v790
        %v807 = vpack.c.b16 %v793, %v792
        %v808 = vpack.c.b16 %v795, %v794
        %v809 = vpack.c.b16 %v797, %v796
        %v810 = vpack.c.b16 %v799, %v798
        %v811 = vpack.c.b16 %v801, %v800
        %v812 = vpack.c.b16 %v803, %v802
        %v813 = vpack.c.b16 %v805, %v804
        %822 = vmatprep.subr.bf16.mxu0 0
        %823 = vmatpush1.bf16.msra.mxu0 %v813
        %824 = vmatprep.subr.bf16.mxu0 0
        %825 = vmatpush1.bf16.msra.mxu0 %v812
        %826 = vmatprep.subr.bf16.mxu0 0
        %827 = vmatpush1.bf16.msra.mxu0 %v811
        %828 = vmatprep.subr.bf16.mxu0 0
        %829 = vmatpush1.bf16.msra.mxu0 %v810
        %830 = vmatprep.subr.bf16.mxu0 0
        %831 = vmatpush1.bf16.msra.mxu0 %v809
        %832 = vmatprep.subr.bf16.mxu0 0
        %833 = vmatpush1.bf16.msra.mxu0 %v808
        %834 = vmatprep.subr.bf16.mxu0 0
        %835 = vmatpush1.bf16.msra.mxu0 %v807
        %836 = vmatprep.subr.bf16.mxu0 0
        %837 = vmatpush1.bf16.msra.mxu0 %v806
        %838 = vmatprep.subr.bf16.mxu0 0
        %839 = vmatpush2.bf16.msra.mxu0 0
        %840 = vmatprep.subr.bf16.mxu0 0
        %841 = vmatpush2.bf16.msra.mxu0 0
        %842 = vmatprep.subr.bf16.mxu0 0
        %843 = vmatpush2.bf16.msra.mxu0 0
        %844 = vmatprep.subr.bf16.mxu0 0
        %845 = vmatpush2.bf16.msra.mxu0 0
        %846 = vmatprep.subr.bf16.mxu0 0
        %847 = vmatpush2.bf16.msra.mxu0 0
        %848 = vmatprep.subr.bf16.mxu0 0
        %849 = vmatpush2.bf16.msra.mxu0 0
        %850 = vmatprep.subr.bf16.mxu0 0
        %851 = vmatpush2.bf16.msra.mxu0 0
        %852 = vmatprep.subr.bf16.mxu0 0
        %853 = vmatpush2.bf16.msra.mxu0 0
        %854 = vmatprep.mubr.bf16.mxu0 0
        %855 = vmatmul.mubr.bf16.gmra.mxu0 %v735
        %v856 = vpop.f32.mrf.mxu0
        %v857 = vadd.f32 %v772, %v856
        %v858 = vpop.f32.mrf.mxu0
        %v859 = vpop.f32.mrf.mxu0
        %v860 = vadd.f32 %v772, %v859
        %v861 = vpop.f32.mrf.mxu0
        %862 = vmatprep.mubr.bf16.mxu0 0
        %863 = vmatmul.mubr.bf16.gmra.mxu0 %v736
        %v864 = vpop.f32.mrf.mxu0
        %v865 = vadd.f32 %v772, %v864
        %v866 = vpop.f32.mrf.mxu0
        %v867 = vpop.f32.mrf.mxu0
        %v868 = vadd.f32 %v772, %v867
        %v869 = vpop.f32.mrf.mxu0
        %870 = vmatprep.mubr.bf16.mxu0 0
        %871 = vmatmul.mubr.bf16.gmra.mxu0 %v737
        %v872 = vpop.f32.mrf.mxu0
        %v873 = vadd.f32 %v772, %v872
        %v874 = vpop.f32.mrf.mxu0
        %v875 = vpop.f32.mrf.mxu0
        %v876 = vadd.f32 %v772, %v875
        %v877 = vpop.f32.mrf.mxu0
        %878 = vmatprep.mubr.bf16.mxu0 0
        %879 = vmatmul.mubr.bf16.gmra.mxu0 %v738
        %v880 = vpop.f32.mrf.mxu0
        %v881 = vadd.f32 %v772, %v880
        %v882 = vpop.f32.mrf.mxu0
        %v883 = vpop.f32.mrf.mxu0
        %v884 = vadd.f32 %v772, %v883
        %v885 = vpop.f32.mrf.mxu0
        %886 = vmatprep.mubr.bf16.mxu0 0
        %887 = vmatmul.mubr.bf16.gmra.mxu0 %v739
        %v888 = vpop.f32.mrf.mxu0
        %v889 = vadd.f32 %v772, %v888
        %v890 = vpop.f32.mrf.mxu0
        %v891 = vpop.f32.mrf.mxu0
        %v892 = vadd.f32 %v772, %v891
        %v893 = vpop.f32.mrf.mxu0
        %894 = vmatprep.mubr.bf16.mxu0 0
        %895 = vmatmul.mubr.bf16.gmra.mxu0 %v740
        %v896 = vpop.f32.mrf.mxu0
        %v897 = vadd.f32 %v772, %v896
        %v898 = vpop.f32.mrf.mxu0
        %v899 = vpop.f32.mrf.mxu0
        %v900 = vadd.f32 %v772, %v899
        %v901 = vpop.f32.mrf.mxu0
        %902 = vmatprep.mubr.bf16.mxu0 0
        %903 = vmatmul.mubr.bf16.gmra.mxu0 %v741
        %v904 = vpop.f32.mrf.mxu0
        %v905 = vadd.f32 %v772, %v904
        %v906 = vpop.f32.mrf.mxu0
        %v907 = vpop.f32.mrf.mxu0
        %v908 = vadd.f32 %v772, %v907
        %v909 = vpop.f32.mrf.mxu0
        %910 = vmatprep.mubr.bf16.mxu0 0
        %911 = vmatmul.mubr.bf16.gmra.mxu0 %v742
        %v912 = vpop.f32.mrf.mxu0
        %v913 = vadd.f32 %v772, %v912
        %v914 = vpop.f32.mrf.mxu0
        %v915 = vpop.f32.mrf.mxu0
        %v916 = vadd.f32 %v772, %v915
        %v917 = vpop.f32.mrf.mxu0
        %918 = vmatprep.mubr.bf16.mxu0 0
        %919 = vmatmul.mubr.bf16.gmra.mxu0 %v743
        %v920 = vpop.f32.mrf.mxu0
        %v921 = vadd.f32 %v772, %v920
        %v922 = vpop.f32.mrf.mxu0
        %v923 = vpop.f32.mrf.mxu0
        %v924 = vadd.f32 %v772, %v923
        %v925 = vpop.f32.mrf.mxu0
        %926 = vmatprep.mubr.bf16.mxu0 0
        %927 = vmatmul.mubr.bf16.gmra.mxu0 %v744
        %v928 = vpop.f32.mrf.mxu0
        %v929 = vadd.f32 %v772, %v928
        %v930 = vpop.f32.mrf.mxu0
        %v931 = vpop.f32.mrf.mxu0
        %v932 = vadd.f32 %v772, %v931
        %v933 = vpop.f32.mrf.mxu0
        %934 = vmatprep.mubr.bf16.mxu0 0
        %935 = vmatmul.mubr.bf16.gmra.mxu0 %v745
        %v936 = vpop.f32.mrf.mxu0
        %v937 = vadd.f32 %v772, %v936
        %v938 = vpop.f32.mrf.mxu0
        %v939 = vpop.f32.mrf.mxu0
        %v940 = vadd.f32 %v772, %v939
        %v941 = vpop.f32.mrf.mxu0
        %942 = vmatprep.mubr.bf16.mxu0 0
        %943 = vmatmul.mubr.bf16.gmra.mxu0 %v746
        %v944 = vpop.f32.mrf.mxu0
        %v945 = vadd.f32 %v772, %v944
        %v946 = vpop.f32.mrf.mxu0
        %v947 = vpop.f32.mrf.mxu0
        %v948 = vadd.f32 %v772, %v947
        %v949 = vpop.f32.mrf.mxu0
        %950 = vmatprep.mubr.bf16.mxu0 0
        %951 = vmatmul.mubr.bf16.gmra.mxu0 %v747
        %v952 = vpop.f32.mrf.mxu0
        %v953 = vadd.f32 %v772, %v952
        %v954 = vpop.f32.mrf.mxu0
        %v955 = vpop.f32.mrf.mxu0
        %v956 = vadd.f32 %v772, %v955
        %v957 = vpop.f32.mrf.mxu0
        %958 = vmatprep.mubr.bf16.mxu0 0
        %959 = vmatmul.mubr.bf16.gmra.mxu0 %v748
        %v960 = vpop.f32.mrf.mxu0
        %v961 = vadd.f32 %v772, %v960
        %v962 = vpop.f32.mrf.mxu0
        %v963 = vpop.f32.mrf.mxu0
        %v964 = vadd.f32 %v772, %v963
        %v965 = vpop.f32.mrf.mxu0
        %966 = vmatprep.mubr.bf16.mxu0 0
        %967 = vmatmul.mubr.bf16.gmra.mxu0 %v749
        %v968 = vpop.f32.mrf.mxu0
        %v969 = vadd.f32 %v772, %v968
        %v970 = vpop.f32.mrf.mxu0
        %v971 = vpop.f32.mrf.mxu0
        %v972 = vadd.f32 %v772, %v971
        %v973 = vpop.f32.mrf.mxu0
        %974 = vmatprep.mubr.bf16.mxu0 0
        %975 = vmatmul.mubr.bf16.gmra.mxu0 %v750
        %v976 = vpop.f32.mrf.mxu0
        %v977 = vadd.f32 %v772, %v976
        %v978 = vpop.f32.mrf.mxu0
        %v979 = vpop.f32.mrf.mxu0
        %v980 = vadd.f32 %v772, %v979
        %v981 = vpop.f32.mrf.mxu0
        %982 = vdwg.mxu0
        %v983 = vmax.f32 %v857, 0.0
        %v984 = vmax.f32 %v860, 0.0
        %v985 = vmax.f32 %v865, 0.0
        %v986 = vmax.f32 %v868, 0.0
        %v987 = vmax.f32 %v873, 0.0
        %v988 = vmax.f32 %v876, 0.0
        %v989 = vmax.f32 %v881, 0.0
        %v990 = vmax.f32 %v884, 0.0
        %v991 = vmax.f32 %v889, 0.0
        %v992 = vmax.f32 %v892, 0.0
        %v993 = vmax.f32 %v897, 0.0
        %v994 = vmax.f32 %v900, 0.0
        %v995 = vmax.f32 %v905, 0.0
        %v996 = vmax.f32 %v908, 0.0
        %v997 = vmax.f32 %v913, 0.0
        %v998 = vmax.f32 %v916, 0.0
        %v999 = vmax.f32 %v921, 0.0
        %v1000 = vmax.f32 %v924, 0.0
        %v1001 = vmax.f32 %v929, 0.0
        %v1002 = vmax.f32 %v932, 0.0
        %v1003 = vmax.f32 %v937, 0.0
        %v1004 = vmax.f32 %v940, 0.0
        %v1005 = vmax.f32 %v945, 0.0
        %v1006 = vmax.f32 %v948, 0.0
        %v1007 = vmax.f32 %v953, 0.0
        %v1008 = vmax.f32 %v956, 0.0
        %v1009 = vmax.f32 %v961, 0.0
        %v1010 = vmax.f32 %v964, 0.0
        %v1011 = vmax.f32 %v969, 0.0
        %v1012 = vmax.f32 %v972, 0.0
        %v1013 = vmax.f32 %v977, 0.0
        %v1014 = vmax.f32 %v980, 0.0
        %v1015 = vadd.f32 %v983, %v703
        %v1016 = vadd.f32 %v984, %v704
        %v1017 = vadd.f32 %v985, %v705
        %v1018 = vadd.f32 %v986, %v706
        %v1019 = vadd.f32 %v987, %v707
        %v1020 = vadd.f32 %v988, %v708
        %v1021 = vadd.f32 %v989, %v709
        %v1022 = vadd.f32 %v990, %v710
        %v1023 = vadd.f32 %v991, %v711
        %v1024 = vadd.f32 %v992, %v712
        %v1025 = vadd.f32 %v993, %v713
        %v1026 = vadd.f32 %v994, %v714
        %v1027 = vadd.f32 %v995, %v715
        %v1028 = vadd.f32 %v996, %v716
        %v1029 = vadd.f32 %v997, %v717
        %v1030 = vadd.f32 %v998, %v718
        %v1031 = vadd.f32 %v999, %v719
        %v1032 = vadd.f32 %v1000, %v720
        %v1033 = vadd.f32 %v1001, %v721
        %v1034 = vadd.f32 %v1002, %v722
        %v1035 = vadd.f32 %v1003, %v723
        %v1036 = vadd.f32 %v1004, %v724
        %v1037 = vadd.f32 %v1005, %v725
        %v1038 = vadd.f32 %v1006, %v726
        %v1039 = vadd.f32 %v1007, %v727
        %v1040 = vadd.f32 %v1008, %v728
        %v1041 = vadd.f32 %v1009, %v729
        %v1042 = vadd.f32 %v1010, %v730
        %v1043 = vadd.f32 %v1011, %v731
        %v1044 = vadd.f32 %v1012, %v732
        %v1045 = vadd.f32 %v1013, %v733
        %v1046 = vadd.f32 %v1014, %v734
        %1047 = vadd.xlane.f32.xlu0 %v1015
        %v1048 = vpop.xlane.xlu0 %1047
        %1049 = vadd.xlane.f32.xlu0 %v1016
        %v1050 = vpop.xlane.xlu0 %1049
        %1051 = vadd.xlane.f32.xlu0 %v1017
        %v1052 = vpop.xlane.xlu0 %1051
        %1053 = vadd.xlane.f32.xlu0 %v1018
        %v1054 = vpop.xlane.xlu0 %1053
        %1055 = vadd.xlane.f32.xlu0 %v1019
        %v1056 = vpop.xlane.xlu0 %1055
        %1057 = vadd.xlane.f32.xlu0 %v1020
        %v1058 = vpop.xlane.xlu0 %1057
        %1059 = vadd.xlane.f32.xlu0 %v1021
        %v1060 = vpop.xlane.xlu0 %1059
        %1061 = vadd.xlane.f32.xlu0 %v1022
        %v1062 = vpop.xlane.xlu0 %1061
        %1063 = vadd.xlane.f32.xlu0 %v1023
        %v1064 = vpop.xlane.xlu0 %1063
        %1065 = vadd.xlane.f32.xlu0 %v1024
        %v1066 = vpop.xlane.xlu0 %1065
        %1067 = vadd.xlane.f32.xlu0 %v1025
        %v1068 = vpop.xlane.xlu0 %1067
        %1069 = vadd.xlane.f32.xlu0 %v1026
        %v1070 = vpop.xlane.xlu0 %1069
        %1071 = vadd.xlane.f32.xlu0 %v1027
        %v1072 = vpop.xlane.xlu0 %1071
        %1073 = vadd.xlane.f32.xlu0 %v1028
        %v1074 = vpop.xlane.xlu0 %1073
        %1075 = vadd.xlane.f32.xlu0 %v1029
        %v1076 = vpop.xlane.xlu0 %1075
        %1077 = vadd.xlane.f32.xlu0 %v1030
        %v1078 = vpop.xlane.xlu0 %1077
        %1079 = vadd.xlane.f32.xlu0 %v1031
        %v1080 = vpop.xlane.xlu0 %1079
        %1081 = vadd.xlane.f32.xlu0 %v1032
        %v1082 = vpop.xlane.xlu0 %1081
        %1083 = vadd.xlane.f32.xlu0 %v1033
        %v1084 = vpop.xlane.xlu0 %1083
        %1085 = vadd.xlane.f32.xlu0 %v1034
        %v1086 = vpop.xlane.xlu0 %1085
        %1087 = vadd.xlane.f32.xlu0 %v1035
        %v1088 = vpop.xlane.xlu0 %1087
        %1089 = vadd.xlane.f32.xlu0 %v1036
        %v1090 = vpop.xlane.xlu0 %1089
        %1091 = vadd.xlane.f32.xlu0 %v1037
        %v1092 = vpop.xlane.xlu0 %1091
        %1093 = vadd.xlane.f32.xlu0 %v1038
        %v1094 = vpop.xlane.xlu0 %1093
        %1095 = vadd.xlane.f32.xlu0 %v1039
        %v1096 = vpop.xlane.xlu0 %1095
        %1097 = vadd.xlane.f32.xlu0 %v1040
        %v1098 = vpop.xlane.xlu0 %1097
        %1099 = vadd.xlane.f32.xlu0 %v1041
        %v1100 = vpop.xlane.xlu0 %1099
        %1101 = vadd.xlane.f32.xlu0 %v1042
        %v1102 = vpop.xlane.xlu0 %1101
        %1103 = vadd.xlane.f32.xlu0 %v1043
        %v1104 = vpop.xlane.xlu0 %1103
        %1105 = vadd.xlane.f32.xlu0 %v1044
        %v1106 = vpop.xlane.xlu0 %1105
        %1107 = vadd.xlane.f32.xlu0 %v1045
        %v1108 = vpop.xlane.xlu0 %1107
        %1109 = vadd.xlane.f32.xlu0 %v1046
        %v1110 = vpop.xlane.xlu0 %1109
        %v1111 = vrcp.pop 128.0
        %v1112 = vmul.f32 %v1048, %v1111
        %v1113 = vmul.f32 %v1050, %v1111
        %v1114 = vmul.f32 %v1052, %v1111
        %v1115 = vmul.f32 %v1054, %v1111
        %v1116 = vmul.f32 %v1056, %v1111
        %v1117 = vmul.f32 %v1058, %v1111
        %v1118 = vmul.f32 %v1060, %v1111
        %v1119 = vmul.f32 %v1062, %v1111
        %v1120 = vmul.f32 %v1064, %v1111
        %v1121 = vmul.f32 %v1066, %v1111
        %v1122 = vmul.f32 %v1068, %v1111
        %v1123 = vmul.f32 %v1070, %v1111
        %v1124 = vmul.f32 %v1072, %v1111
        %v1125 = vmul.f32 %v1074, %v1111
        %v1126 = vmul.f32 %v1076, %v1111
        %v1127 = vmul.f32 %v1078, %v1111
        %v1128 = vmul.f32 %v1080, %v1111
        %v1129 = vmul.f32 %v1082, %v1111
        %v1130 = vmul.f32 %v1084, %v1111
        %v1131 = vmul.f32 %v1086, %v1111
        %v1132 = vmul.f32 %v1088, %v1111
        %v1133 = vmul.f32 %v1090, %v1111
        %v1134 = vmul.f32 %v1092, %v1111
        %v1135 = vmul.f32 %v1094, %v1111
        %v1136 = vmul.f32 %v1096, %v1111
        %v1137 = vmul.f32 %v1098, %v1111
        %v1138 = vmul.f32 %v1100, %v1111
        %v1139 = vmul.f32 %v1102, %v1111
        %v1140 = vmul.f32 %v1104, %v1111
        %v1141 = vmul.f32 %v1106, %v1111
        %v1142 = vmul.f32 %v1108, %v1111
        %v1143 = vmul.f32 %v1110, %v1111
        %v1144 = vsub.f32 %v1015, %v1112
        %v1145 = vsub.f32 %v1016, %v1113
        %v1146 = vsub.f32 %v1017, %v1114
        %v1147 = vsub.f32 %v1018, %v1115
        %v1148 = vsub.f32 %v1019, %v1116
        %v1149 = vsub.f32 %v1020, %v1117
        %v1150 = vsub.f32 %v1021, %v1118
        %v1151 = vsub.f32 %v1022, %v1119
        %v1152 = vsub.f32 %v1023, %v1120
        %v1153 = vsub.f32 %v1024, %v1121
        %v1154 = vsub.f32 %v1025, %v1122
        %v1155 = vsub.f32 %v1026, %v1123
        %v1156 = vsub.f32 %v1027, %v1124
        %v1157 = vsub.f32 %v1028, %v1125
        %v1158 = vsub.f32 %v1029, %v1126
        %v1159 = vsub.f32 %v1030, %v1127
        %v1160 = vsub.f32 %v1031, %v1128
        %v1161 = vsub.f32 %v1032, %v1129
        %v1162 = vsub.f32 %v1033, %v1130
        %v1163 = vsub.f32 %v1034, %v1131
        %v1164 = vsub.f32 %v1035, %v1132
        %v1165 = vsub.f32 %v1036, %v1133
        %v1166 = vsub.f32 %v1037, %v1134
        %v1167 = vsub.f32 %v1038, %v1135
        %v1168 = vsub.f32 %v1039, %v1136
        %v1169 = vsub.f32 %v1040, %v1137
        %v1170 = vsub.f32 %v1041, %v1138
        %v1171 = vsub.f32 %v1042, %v1139
        %v1172 = vsub.f32 %v1043, %v1140
        %v1173 = vsub.f32 %v1044, %v1141
        %v1174 = vsub.f32 %v1045, %v1142
        %v1175 = vsub.f32 %v1046, %v1143
        %v1176 = vmul.f32 %v1144, %v1144
        %v1177 = vmul.f32 %v1145, %v1145
        %v1178 = vmul.f32 %v1146, %v1146
        %v1179 = vmul.f32 %v1147, %v1147
        %v1180 = vmul.f32 %v1148, %v1148
        %v1181 = vmul.f32 %v1149, %v1149
        %v1182 = vmul.f32 %v1150, %v1150
        %v1183 = vmul.f32 %v1151, %v1151
        %v1184 = vmul.f32 %v1152, %v1152
        %v1185 = vmul.f32 %v1153, %v1153
        %v1186 = vmul.f32 %v1154, %v1154
        %v1187 = vmul.f32 %v1155, %v1155
        %v1188 = vmul.f32 %v1156, %v1156
        %v1189 = vmul.f32 %v1157, %v1157
        %v1190 = vmul.f32 %v1158, %v1158
        %v1191 = vmul.f32 %v1159, %v1159
        %v1192 = vmul.f32 %v1160, %v1160
        %v1193 = vmul.f32 %v1161, %v1161
        %v1194 = vmul.f32 %v1162, %v1162
        %v1195 = vmul.f32 %v1163, %v1163
        %v1196 = vmul.f32 %v1164, %v1164
        %v1197 = vmul.f32 %v1165, %v1165
        %v1198 = vmul.f32 %v1166, %v1166
        %v1199 = vmul.f32 %v1167, %v1167
        %v1200 = vmul.f32 %v1168, %v1168
        %v1201 = vmul.f32 %v1169, %v1169
        %v1202 = vmul.f32 %v1170, %v1170
        %v1203 = vmul.f32 %v1171, %v1171
        %v1204 = vmul.f32 %v1172, %v1172
        %v1205 = vmul.f32 %v1173, %v1173
        %v1206 = vmul.f32 %v1174, %v1174
        %v1207 = vmul.f32 %v1175, %v1175
        %1208 = vadd.xlane.f32.xlu0 %v1176
        %v1209 = vpop.xlane.xlu0 %1208
        %1210 = vadd.xlane.f32.xlu0 %v1177
        %v1211 = vpop.xlane.xlu0 %1210
        %1212 = vadd.xlane.f32.xlu0 %v1178
        %v1213 = vpop.xlane.xlu0 %1212
        %1214 = vadd.xlane.f32.xlu0 %v1179
        %v1215 = vpop.xlane.xlu0 %1214
        %1216 = vadd.xlane.f32.xlu0 %v1180
        %v1217 = vpop.xlane.xlu0 %1216
        %1218 = vadd.xlane.f32.xlu0 %v1181
        %v1219 = vpop.xlane.xlu0 %1218
        %1220 = vadd.xlane.f32.xlu0 %v1182
        %v1221 = vpop.xlane.xlu0 %1220
        %1222 = vadd.xlane.f32.xlu0 %v1183
        %v1223 = vpop.xlane.xlu0 %1222
        %1224 = vadd.xlane.f32.xlu0 %v1184
        %v1225 = vpop.xlane.xlu0 %1224
        %1226 = vadd.xlane.f32.xlu0 %v1185
        %v1227 = vpop.xlane.xlu0 %1226
        %1228 = vadd.xlane.f32.xlu0 %v1186
        %v1229 = vpop.xlane.xlu0 %1228
        %1230 = vadd.xlane.f32.xlu0 %v1187
        %v1231 = vpop.xlane.xlu0 %1230
        %1232 = vadd.xlane.f32.xlu0 %v1188
        %v1233 = vpop.xlane.xlu0 %1232
        %1234 = vadd.xlane.f32.xlu0 %v1189
        %v1235 = vpop.xlane.xlu0 %1234
        %1236 = vadd.xlane.f32.xlu0 %v1190
        %v1237 = vpop.xlane.xlu0 %1236
        %1238 = vadd.xlane.f32.xlu0 %v1191
        %v1239 = vpop.xlane.xlu0 %1238
        %1240 = vadd.xlane.f32.xlu0 %v1192
        %v1241 = vpop.xlane.xlu0 %1240
        %1242 = vadd.xlane.f32.xlu0 %v1193
        %v1243 = vpop.xlane.xlu0 %1242
        %1244 = vadd.xlane.f32.xlu0 %v1194
        %v1245 = vpop.xlane.xlu0 %1244
        %1246 = vadd.xlane.f32.xlu0 %v1195
        %v1247 = vpop.xlane.xlu0 %1246
        %1248 = vadd.xlane.f32.xlu0 %v1196
        %v1249 = vpop.xlane.xlu0 %1248
        %1250 = vadd.xlane.f32.xlu0 %v1197
        %v1251 = vpop.xlane.xlu0 %1250
        %1252 = vadd.xlane.f32.xlu0 %v1198
        %v1253 = vpop.xlane.xlu0 %1252
        %1254 = vadd.xlane.f32.xlu0 %v1199
        %v1255 = vpop.xlane.xlu0 %1254
        %1256 = vadd.xlane.f32.xlu0 %v1200
        %v1257 = vpop.xlane.xlu0 %1256
        %1258 = vadd.xlane.f32.xlu0 %v1201
        %v1259 = vpop.xlane.xlu0 %1258
        %1260 = vadd.xlane.f32.xlu0 %v1202
        %v1261 = vpop.xlane.xlu0 %1260
        %1262 = vadd.xlane.f32.xlu0 %v1203
        %v1263 = vpop.xlane.xlu0 %1262
        %1264 = vadd.xlane.f32.xlu0 %v1204
        %v1265 = vpop.xlane.xlu0 %1264
        %1266 = vadd.xlane.f32.xlu0 %v1205
        %v1267 = vpop.xlane.xlu0 %1266
        %1268 = vadd.xlane.f32.xlu0 %v1206
        %v1269 = vpop.xlane.xlu0 %1268
        %1270 = vadd.xlane.f32.xlu0 %v1207
        %v1271 = vpop.xlane.xlu0 %1270
        %v1272 = vmul.f32 %v1209, %v1111
        %v1273 = vmul.f32 %v1211, %v1111
        %v1274 = vmul.f32 %v1213, %v1111
        %v1275 = vmul.f32 %v1215, %v1111
        %v1276 = vmul.f32 %v1217, %v1111
        %v1277 = vmul.f32 %v1219, %v1111
        %v1278 = vmul.f32 %v1221, %v1111
        %v1279 = vmul.f32 %v1223, %v1111
        %v1280 = vmul.f32 %v1225, %v1111
        %v1281 = vmul.f32 %v1227, %v1111
        %v1282 = vmul.f32 %v1229, %v1111
        %v1283 = vmul.f32 %v1231, %v1111
        %v1284 = vmul.f32 %v1233, %v1111
        %v1285 = vmul.f32 %v1235, %v1111
        %v1286 = vmul.f32 %v1237, %v1111
        %v1287 = vmul.f32 %v1239, %v1111
        %v1288 = vmul.f32 %v1241, %v1111
        %v1289 = vmul.f32 %v1243, %v1111
        %v1290 = vmul.f32 %v1245, %v1111
        %v1291 = vmul.f32 %v1247, %v1111
        %v1292 = vmul.f32 %v1249, %v1111
        %v1293 = vmul.f32 %v1251, %v1111
        %v1294 = vmul.f32 %v1253, %v1111
        %v1295 = vmul.f32 %v1255, %v1111
        %v1296 = vmul.f32 %v1257, %v1111
        %v1297 = vmul.f32 %v1259, %v1111
        %v1298 = vmul.f32 %v1261, %v1111
        %v1299 = vmul.f32 %v1263, %v1111
        %v1300 = vmul.f32 %v1265, %v1111
        %v1301 = vmul.f32 %v1267, %v1111
        %v1302 = vmul.f32 %v1269, %v1111
        %v1303 = vmul.f32 %v1271, %v1111
        %v1304 = vadd.f32 %v1272, 1e-05
        %v1305 = vadd.f32 %v1273, 1e-05
        %v1306 = vadd.f32 %v1274, 1e-05
        %v1307 = vadd.f32 %v1275, 1e-05
        %v1308 = vadd.f32 %v1276, 1e-05
        %v1309 = vadd.f32 %v1277, 1e-05
        %v1310 = vadd.f32 %v1278, 1e-05
        %v1311 = vadd.f32 %v1279, 1e-05
        %v1312 = vadd.f32 %v1280, 1e-05
        %v1313 = vadd.f32 %v1281, 1e-05
        %v1314 = vadd.f32 %v1282, 1e-05
        %v1315 = vadd.f32 %v1283, 1e-05
        %v1316 = vadd.f32 %v1284, 1e-05
        %v1317 = vadd.f32 %v1285, 1e-05
        %v1318 = vadd.f32 %v1286, 1e-05
        %v1319 = vadd.f32 %v1287, 1e-05
        %v1320 = vadd.f32 %v1288, 1e-05
        %v1321 = vadd.f32 %v1289, 1e-05
        %v1322 = vadd.f32 %v1290, 1e-05
        %v1323 = vadd.f32 %v1291, 1e-05
        %v1324 = vadd.f32 %v1292, 1e-05
        %v1325 = vadd.f32 %v1293, 1e-05
        %v1326 = vadd.f32 %v1294, 1e-05
        %v1327 = vadd.f32 %v1295, 1e-05
        %v1328 = vadd.f32 %v1296, 1e-05
        %v1329 = vadd.f32 %v1297, 1e-05
        %v1330 = vadd.f32 %v1298, 1e-05
        %v1331 = vadd.f32 %v1299, 1e-05
        %v1332 = vadd.f32 %v1300, 1e-05
        %v1333 = vadd.f32 %v1301, 1e-05
        %v1334 = vadd.f32 %v1302, 1e-05
        %v1335 = vadd.f32 %v1303, 1e-05
        %v1336 = vrsqrt.pop %v1304
        %v1337 = vrsqrt.pop %v1305
        %v1338 = vrsqrt.pop %v1306
        %v1339 = vrsqrt.pop %v1307
        %v1340 = vrsqrt.pop %v1308
        %v1341 = vrsqrt.pop %v1309
        %v1342 = vrsqrt.pop %v1310
        %v1343 = vrsqrt.pop %v1311
        %v1344 = vrsqrt.pop %v1312
        %v1345 = vrsqrt.pop %v1313
        %v1346 = vrsqrt.pop %v1314
        %v1347 = vrsqrt.pop %v1315
        %v1348 = vrsqrt.pop %v1316
        %v1349 = vrsqrt.pop %v1317
        %v1350 = vrsqrt.pop %v1318
        %v1351 = vrsqrt.pop %v1319
        %v1352 = vrsqrt.pop %v1320
        %v1353 = vrsqrt.pop %v1321
        %v1354 = vrsqrt.pop %v1322
        %v1355 = vrsqrt.pop %v1323
        %v1356 = vrsqrt.pop %v1324
        %v1357 = vrsqrt.pop %v1325
        %v1358 = vrsqrt.pop %v1326
        %v1359 = vrsqrt.pop %v1327
        %v1360 = vrsqrt.pop %v1328
        %v1361 = vrsqrt.pop %v1329
        %v1362 = vrsqrt.pop %v1330
        %v1363 = vrsqrt.pop %v1331
        %v1364 = vrsqrt.pop %v1332
        %v1365 = vrsqrt.pop %v1333
        %v1366 = vrsqrt.pop %v1334
        %v1367 = vrsqrt.pop %v1335
        %v1368 = vmul.f32 %v1144, %v1336
        %v1369 = vmul.f32 %v1145, %v1337
        %v1370 = vmul.f32 %v1146, %v1338
        %v1371 = vmul.f32 %v1147, %v1339
        %v1372 = vmul.f32 %v1148, %v1340
        %v1373 = vmul.f32 %v1149, %v1341
        %v1374 = vmul.f32 %v1150, %v1342
        %v1375 = vmul.f32 %v1151, %v1343
        %v1376 = vmul.f32 %v1152, %v1344
        %v1377 = vmul.f32 %v1153, %v1345
        %v1378 = vmul.f32 %v1154, %v1346
        %v1379 = vmul.f32 %v1155, %v1347
        %v1380 = vmul.f32 %v1156, %v1348
        %v1381 = vmul.f32 %v1157, %v1349
        %v1382 = vmul.f32 %v1158, %v1350
        %v1383 = vmul.f32 %v1159, %v1351
        %v1384 = vmul.f32 %v1160, %v1352
        %v1385 = vmul.f32 %v1161, %v1353
        %v1386 = vmul.f32 %v1162, %v1354
        %v1387 = vmul.f32 %v1163, %v1355
        %v1388 = vmul.f32 %v1164, %v1356
        %v1389 = vmul.f32 %v1165, %v1357
        %v1390 = vmul.f32 %v1166, %v1358
        %v1391 = vmul.f32 %v1167, %v1359
        %v1392 = vmul.f32 %v1168, %v1360
        %v1393 = vmul.f32 %v1169, %v1361
        %v1394 = vmul.f32 %v1170, %v1362
        %v1395 = vmul.f32 %v1171, %v1363
        %v1396 = vmul.f32 %v1172, %v1364
        %v1397 = vmul.f32 %v1173, %v1365
        %v1398 = vmul.f32 %v1174, %v1366
        %v1399 = vmul.f32 %v1175, %v1367
        %v1400 = vld [vmem:[%s5] sm:$0x1]
        %v1402 = vlaneseq
        %v1403 = vshrl.u32 %v1402, 7
        %v1404 = vsub.s32 0, %v1403
        %v1405 = vrot.slane %v1400, %v1404
        %v1407 = vmul.f32 %v1368, %v1405
        %v1408 = vmul.f32 %v1369, %v1405
        %v1409 = vmul.f32 %v1370, %v1405
        %v1410 = vmul.f32 %v1371, %v1405
        %v1411 = vmul.f32 %v1372, %v1405
        %v1412 = vmul.f32 %v1373, %v1405
        %v1413 = vmul.f32 %v1374, %v1405
        %v1414 = vmul.f32 %v1375, %v1405
        %v1415 = vmul.f32 %v1376, %v1405
        %v1416 = vmul.f32 %v1377, %v1405
        %v1417 = vmul.f32 %v1378, %v1405
        %v1418 = vmul.f32 %v1379, %v1405
        %v1419 = vmul.f32 %v1380, %v1405
        %v1420 = vmul.f32 %v1381, %v1405
        %v1421 = vmul.f32 %v1382, %v1405
        %v1422 = vmul.f32 %v1383, %v1405
        %v1423 = vmul.f32 %v1384, %v1405
        %v1424 = vmul.f32 %v1385, %v1405
        %v1425 = vmul.f32 %v1386, %v1405
        %v1426 = vmul.f32 %v1387, %v1405
        %v1427 = vmul.f32 %v1388, %v1405
        %v1428 = vmul.f32 %v1389, %v1405
        %v1429 = vmul.f32 %v1390, %v1405
        %v1430 = vmul.f32 %v1391, %v1405
        %v1431 = vmul.f32 %v1392, %v1405
        %v1432 = vmul.f32 %v1393, %v1405
        %v1433 = vmul.f32 %v1394, %v1405
        %v1434 = vmul.f32 %v1395, %v1405
        %v1435 = vmul.f32 %v1396, %v1405
        %v1436 = vmul.f32 %v1397, %v1405
        %v1437 = vmul.f32 %v1398, %v1405
        %v1438 = vmul.f32 %v1399, %v1405
        %v1439 = vld [vmem:[%s6] sm:$0x1]
        %v1441 = vlaneseq
        %v1442 = vshrl.u32 %v1441, 7
        %v1443 = vsub.s32 0, %v1442
        %v1444 = vrot.slane %v1439, %v1443
        %v1446 = vadd.f32 %v1407, %v1444
        %v1447 = vadd.f32 %v1408, %v1444
        %v1448 = vadd.f32 %v1409, %v1444
        %v1449 = vadd.f32 %v1410, %v1444
        %v1450 = vadd.f32 %v1411, %v1444
        %v1451 = vadd.f32 %v1412, %v1444
        %v1452 = vadd.f32 %v1413, %v1444
        %v1453 = vadd.f32 %v1414, %v1444
        %v1454 = vadd.f32 %v1415, %v1444
        %v1455 = vadd.f32 %v1416, %v1444
        %v1456 = vadd.f32 %v1417, %v1444
        %v1457 = vadd.f32 %v1418, %v1444
        %v1458 = vadd.f32 %v1419, %v1444
        %v1459 = vadd.f32 %v1420, %v1444
        %v1460 = vadd.f32 %v1421, %v1444
        %v1461 = vadd.f32 %v1422, %v1444
        %v1462 = vadd.f32 %v1423, %v1444
        %v1463 = vadd.f32 %v1424, %v1444
        %v1464 = vadd.f32 %v1425, %v1444
        %v1465 = vadd.f32 %v1426, %v1444
        %v1466 = vadd.f32 %v1427, %v1444
        %v1467 = vadd.f32 %v1428, %v1444
        %v1468 = vadd.f32 %v1429, %v1444
        %v1469 = vadd.f32 %v1430, %v1444
        %v1470 = vadd.f32 %v1431, %v1444
        %v1471 = vadd.f32 %v1432, %v1444
        %v1472 = vadd.f32 %v1433, %v1444
        %v1473 = vadd.f32 %v1434, %v1444
        %v1474 = vadd.f32 %v1435, %v1444
        %v1475 = vadd.f32 %v1436, %v1444
        %v1476 = vadd.f32 %v1437, %v1444
        %v1477 = vadd.f32 %v1438, %v1444
        %v1478 = vpack.c.bf16 %v1447, %v1446
        %v1479 = vpack.c.bf16 %v1449, %v1448
        %v1480 = vpack.c.bf16 %v1451, %v1450
        %v1481 = vpack.c.bf16 %v1453, %v1452
        %v1482 = vpack.c.bf16 %v1455, %v1454
        %v1483 = vpack.c.bf16 %v1457, %v1456
        %v1484 = vpack.c.bf16 %v1459, %v1458
        %v1485 = vpack.c.bf16 %v1461, %v1460
        %v1486 = vpack.c.bf16 %v1463, %v1462
        %v1487 = vpack.c.bf16 %v1465, %v1464
        %v1488 = vpack.c.bf16 %v1467, %v1466
        %v1489 = vpack.c.bf16 %v1469, %v1468
        %v1490 = vpack.c.bf16 %v1471, %v1470
        %v1491 = vpack.c.bf16 %v1473, %v1472
        %v1492 = vpack.c.bf16 %v1475, %v1474
        %v1493 = vpack.c.bf16 %v1477, %v1476
        %v1510 = vunpack.c.l.b16 %v1478
        %v1511 = vunpack.c.h.b16 %v1478
        %v1512 = vunpack.c.l.b16 %v1479
        %v1513 = vunpack.c.h.b16 %v1479
        %v1514 = vunpack.c.l.b16 %v1480
        %v1515 = vunpack.c.h.b16 %v1480
        %v1516 = vunpack.c.l.b16 %v1481
        %v1517 = vunpack.c.h.b16 %v1481
        %v1518 = vunpack.c.l.b16 %v1482
        %v1519 = vunpack.c.h.b16 %v1482
        %v1520 = vunpack.c.l.b16 %v1483
        %v1521 = vunpack.c.h.b16 %v1483
        %v1522 = vunpack.c.l.b16 %v1484
        %v1523 = vunpack.c.h.b16 %v1484
        %v1524 = vunpack.c.l.b16 %v1485
        %v1525 = vunpack.c.h.b16 %v1485
        %v1526 = vunpack.c.l.b16 %v1486
        %v1527 = vunpack.c.h.b16 %v1486
        %v1528 = vunpack.c.l.b16 %v1487
        %v1529 = vunpack.c.h.b16 %v1487
        %v1530 = vunpack.c.l.b16 %v1488
        %v1531 = vunpack.c.h.b16 %v1488
        %v1532 = vunpack.c.l.b16 %v1489
        %v1533 = vunpack.c.h.b16 %v1489
        %v1534 = vunpack.c.l.b16 %v1490
        %v1535 = vunpack.c.h.b16 %v1490
        %v1536 = vunpack.c.l.b16 %v1491
        %v1537 = vunpack.c.h.b16 %v1491
        %v1538 = vunpack.c.l.b16 %v1492
        %v1539 = vunpack.c.h.b16 %v1492
        %v1540 = vunpack.c.l.b16 %v1493
        %v1541 = vunpack.c.h.b16 %v1493
        %v1542 = vpack.c.b16 %v1510, %v1510
        %v1543 = vpack.c.b16 %v1511, %v1511
        %v1544 = vpack.c.b16 %v1512, %v1512
        %v1545 = vpack.c.b16 %v1513, %v1513
        %v1546 = vpack.c.b16 %v1514, %v1514
        %v1547 = vpack.c.b16 %v1515, %v1515
        %v1548 = vpack.c.b16 %v1516, %v1516
        %v1549 = vpack.c.b16 %v1517, %v1517
        %v1550 = vpack.c.b16 %v1518, %v1518
        %v1551 = vpack.c.b16 %v1519, %v1519
        %v1552 = vpack.c.b16 %v1520, %v1520
        %v1553 = vpack.c.b16 %v1521, %v1521
        %v1554 = vpack.c.b16 %v1522, %v1522
        %v1555 = vpack.c.b16 %v1523, %v1523
        %v1556 = vpack.c.b16 %v1524, %v1524
        %v1557 = vpack.c.b16 %v1525, %v1525
        %v1558 = vpack.c.b16 %v1526, %v1526
        %v1559 = vpack.c.b16 %v1527, %v1527
        %v1560 = vpack.c.b16 %v1528, %v1528
        %v1561 = vpack.c.b16 %v1529, %v1529
        %v1562 = vpack.c.b16 %v1530, %v1530
        %v1563 = vpack.c.b16 %v1531, %v1531
        %v1564 = vpack.c.b16 %v1532, %v1532
        %v1565 = vpack.c.b16 %v1533, %v1533
        %v1566 = vpack.c.b16 %v1534, %v1534
        %v1567 = vpack.c.b16 %v1535, %v1535
        %v1568 = vpack.c.b16 %v1536, %v1536
        %v1569 = vpack.c.b16 %v1537, %v1537
        %v1570 = vpack.c.b16 %v1538, %v1538
        %v1571 = vpack.c.b16 %v1539, %v1539
        %v1572 = vpack.c.b16 %v1540, %v1540
        %v1573 = vpack.c.b16 %v1541, %v1541
        %1606 = vst [vmem:[%s331] sm:$0xf] %v1542
        %1607 = vst [vmem:[%s331 + $0x4] sm:$0xf] %v1543
        %1608 = vst [vmem:[%s331 + $0x8] sm:$0xf] %v1544
        %1609 = vst [vmem:[%s331 + $0xc] sm:$0xf] %v1545
        %1610 = vst [vmem:[%s331 + $0x10] sm:$0xf] %v1546
        %1611 = vst [vmem:[%s331 + $0x14] sm:$0xf] %v1547
        %1612 = vst [vmem:[%s331 + $0x18] sm:$0xf] %v1548
        %1613 = vst [vmem:[%s331 + $0x1c] sm:$0xf] %v1549
        %1614 = vst [vmem:[%s331 + $0x20] sm:$0xf] %v1550
        %1615 = vst [vmem:[%s331 + $0x24] sm:$0xf] %v1551
        %1616 = vst [vmem:[%s331 + $0x28] sm:$0xf] %v1552
        %1617 = vst [vmem:[%s331 + $0x2c] sm:$0xf] %v1553
        %1618 = vst [vmem:[%s331 + $0x30] sm:$0xf] %v1554
        %1619 = vst [vmem:[%s331 + $0x34] sm:$0xf] %v1555
        %1620 = vst [vmem:[%s331 + $0x38] sm:$0xf] %v1556
        %1621 = vst [vmem:[%s331 + $0x3c] sm:$0xf] %v1557
        %1622 = vst [vmem:[%s331 + $0x40] sm:$0xf] %v1558
        %1623 = vst [vmem:[%s331 + $0x44] sm:$0xf] %v1559
        %1624 = vst [vmem:[%s331 + $0x48] sm:$0xf] %v1560
        %1625 = vst [vmem:[%s331 + $0x4c] sm:$0xf] %v1561
        %1626 = vst [vmem:[%s331 + $0x50] sm:$0xf] %v1562
        %1627 = vst [vmem:[%s331 + $0x54] sm:$0xf] %v1563
        %1628 = vst [vmem:[%s331 + $0x58] sm:$0xf] %v1564
        %1629 = vst [vmem:[%s331 + $0x5c] sm:$0xf] %v1565
        %1630 = vst [vmem:[%s331 + $0x60] sm:$0xf] %v1566
        %1631 = vst [vmem:[%s331 + $0x64] sm:$0xf] %v1567
        %1632 = vst [vmem:[%s331 + $0x68] sm:$0xf] %v1568
        %1633 = vst [vmem:[%s331 + $0x6c] sm:$0xf] %v1569
        %1634 = vst [vmem:[%s331 + $0x70] sm:$0xf] %v1570
        %1635 = vst [vmem:[%s331 + $0x74] sm:$0xf] %v1571
        %1636 = vst [vmem:[%s331 + $0x78] sm:$0xf] %v1572
        %1637 = vst [vmem:[%s331 + $0x7c] sm:$0xf] %v1573
        %s1638 = sand.u32 %s185, 1
        %s1639 = scalar_lea.sflag [#allocation4], %s1638
        %s1640 = sand.u32 %s185, 1
        %s1641 = smul.addr %s1640, 128
        %s1642 = scalar_lea.vmem [#allocation8], %s1641
        // Predicated region
        $region61: #{tpu_custom_call.1} parent=47 // pred_check
          %p1643 = pneg %p195
        $region62: #{tpu_custom_call.1} parent=47 // pred_check_branch
          %1645 = sbr.rel (%p1643) target = $region64
        $region63: #{tpu_custom_call.1} parent=47 // pred_region
          %s1646 = smul.u32 32, %s25
          %s1647 = ssub.s32 125, %s1646
          %p1648 = scmp.lt.s32.totalorder %s1647, 32
          %s1649 = scalar_select %p1648, %s1647, 32
          %s1650 = smul.u32 64, %s1649
          %s1652 = ssub.s32 2048, %s1650
          %1653 = vsyncadd %s1639, %s1652
          %p1654 = scmp.ne.s32.totalorder 0, %s1650
          %s1655 = smul.addr %s1646, 64
          %s1656 = scalar_lea.hbm %s7, %s1655
          %s1657 = smul.u32 4, %s1649
          %s1658 = sshll.u32 %s1642, 4
          %s1659 = int_to_ptr.vmem [resolvable:$true] %s1658
          %s1660 = sshll.u32 %s1657, 4
          %1664 = dma.vmem_to_hbm [thread:$0]  (%p1654), %s1659, %s1660, %s1656, %s1639, 64, 64, 4
        $region64: #{tpu_custom_call.1} parent=47 // pred_fallthru
          _
      $region48: #{tpu_custom_call.1} parent=5 // pred_fallthru
        _
      %p1665 = scmp.le.s32.totalorder 2, %s20
      // Predicated region
      $region65: #{tpu_custom_call.1} parent=5 // pred_check
        %p1666 = pneg %p1665
      $region66: #{tpu_custom_call.1} parent=5 // pred_check_branch
        %1668 = sbr.rel (%p1666) target = $region68
      $region67: #{tpu_custom_call.1} parent=5 // pred_region
        %s1669 = ssub.s32 %s20, 2
        // Predicated region
        $region69: #{tpu_custom_call.1} parent=67 // pred_check
          %p1670 = pneg %p201
        $region70: #{tpu_custom_call.1} parent=67 // pred_check_branch
          %1672 = sbr.rel (%p1670) target = $region72
        $region71: #{tpu_custom_call.1} parent=67 // pred_region
          %s1673 = sand.u32 %s186, 1
          %s1674 = scalar_lea.sflag [#allocation4], %s1673
          %s1675 = sand.u32 %s186, 1
          %s1676 = smul.addr %s1675, 128
          %s1677 = scalar_lea.vmem [#allocation8], %s1676
          %1678 = dma.done %s1674, 2048
        $region72: #{tpu_custom_call.1} parent=67 // pred_fallthru
          _
      $region68: #{tpu_custom_call.1} parent=5 // pred_fallthru
        _
    $region6: #{tpu_custom_call.1} parent=1 // loop_footer
      %s24 = sadd.s32 1, %s20
    $region7: #{tpu_custom_call.1} parent=1 // loop_footer_branch
      %19 = sbr.rel target = $region3
    $region8: #{tpu_custom_call.1} parent=1 // loop_exit
      _
    %1679 = vsyncpa [#allocation3], 1
    %s1680 = scalar_lea.sflag [#allocation3], 1
    %1681 = vsyncpa %s1680, 1
    %1682 = vsyncpa [#allocation6], 1
    %1683 = vsyncpa [#allocation4], 1
    %s1684 = scalar_lea.sflag [#allocation4], 1
    %1685 = vsyncpa %s1684, 1

</llo_original>
